<compile_context>
chip_gen: v6e
topology: v6e:2x2x1
jax: 0.10.0
libtpu: 0.0.40
codegen_flags: <defaults>
</compile_context>

<pallas_src>
import functools

import jax
import jax.numpy as jnp
from jax import lax
from jax.experimental import pallas as pl
from jax.experimental.pallas import tpu as pltpu


def _softplus(x):
    # PyTorch nn.Softplus(beta=1, threshold=20): exactly linear above threshold.
    return jnp.where(x > 20.0, x, jnp.log(1.0 + jnp.exp(jnp.minimum(x, 20.0))))


def _resblock_kernel(x_ref, p_ref, o_ref, *, H, W):
    BC, HW = x_ref.shape
    x = x_ref[...]                                   # (B*C, HW), f32

    # ---- 9-tap lane shifts + boundary masks for a SAME 3x3 conv ----------
    pos = lax.broadcasted_iota(jnp.int32, (BC, HW), 1)
    if (W & (W - 1)) == 0:                           # power-of-two width
        col = pos & (W - 1)
    else:
        col = pos % W
    row_ge1 = pos >= W
    row_ltm = pos < (H - 1) * W
    col_ge1 = col >= 1
    col_ltm = col < (W - 1)

    taps = []
    for dh in (-1, 0, 1):
        h_ok = row_ge1 if dh == -1 else (row_ltm if dh == 1 else None)
        for dw in (-1, 0, 1):
            w_ok = col_ge1 if dw == -1 else (col_ltm if dw == 1 else None)
            if h_ok is None:
                mask = w_ok
            elif w_ok is None:
                mask = h_ok
            else:
                mask = h_ok & w_ok
            shift = (-(dh * W + dw)) % HW            # non-negative lane roll
            taps.append((shift, mask))

    ones_row = jnp.ones((1, HW), jnp.float32)        # bias "tap"

    def conv3x3(inp, w_packed):
        # im2col stack: (9*B*C + 1, HW); single MXU matmul with bias folded in.
        pieces = []
        for shift, mask in taps:
            t = inp if shift == 0 else pltpu.roll(inp, shift, axis=1)
            if mask is not None:
                t = jnp.where(mask, t, 0.0)
            pieces.append(t)
        pieces.append(ones_row)
        stacked = jnp.concatenate(pieces, axis=0)    # (9*BC + 1, HW)
        return jnp.dot(w_packed, stacked,
                       preferred_element_type=jnp.float32,
                       precision=lax.Precision.HIGHEST)

    out1 = _softplus(conv3x3(x, p_ref[0]))           # conv1 + softplus
    out2 = conv3x3(out1, p_ref[1])                   # conv2
    o_ref[...] = _softplus(out2 + x).astype(o_ref.dtype)


def _pack_conv(w, b, B, C):
    """PyTorch (Cout, Cin, 3, 3) + (Cout,) -> (B*C, 9*B*C + 1) im2col weight."""
    eye = jnp.eye(B, dtype=jnp.float32)
    blocks = [jnp.kron(eye, w[:, :, kh, kw].astype(jnp.float32))   # (B*C, B*C)
              for kh in range(3) for kw in range(3)]               # t = kh*3+kw
    bias_col = jnp.tile(b.astype(jnp.float32), B).reshape(B * C, 1)
    return jnp.concatenate(blocks + [bias_col], axis=1)


def residual_block_pallas(x_nchw, w1, b1, w2, b2):
    """x_nchw: (B, C, H, W); conv weights in PyTorch (Cout, Cin, 3, 3) layout."""
    B, C, H, W = x_nchw.shape
    HW = H * W

    # Contiguous reshape only (no transpose): row index = b*C + c.
    x_flat = x_nchw.astype(jnp.float32).reshape(B * C, HW)

    # One packed parameter array for both convs -> a single extra input DMA.
    params = jnp.stack([_pack_conv(w1, b1, B, C),
                        _pack_conv(w2, b2, B, C)], axis=0)   # (2, B*C, 9*B*C+1)

    kernel = functools.partial(_resblock_kernel, H=H, W=W)

    # No grid: one step, whole arrays resident in VMEM (x: 8 KiB, params ~5 KiB).
    out_flat = pl.pallas_call(
        kernel,
        out_shape=jax.ShapeDtypeStruct((B * C, HW), jnp.float32),
    )(x_flat, params)

    return out_flat.reshape(B, C, H, W)


def residual_block_ref(x_nchw, w1, b1, w2, b2):
    """Pure-JAX reference (NCHW, same semantics as the PyTorch module)."""
    dn = lax.conv_dimension_numbers(x_nchw.shape, w1.shape,
                                    ('NCHW', 'OIHW', 'NCHW'))
    out = lax.conv_general_dilated(x_nchw, w1, (1, 1), 'SAME',
                                   dimension_numbers=dn,
                                   precision=lax.Precision.HIGHEST)
    out = out + b1[None, :, None, None]
    out = _softplus(out)
    out = lax.conv_general_dilated(out, w2, (1, 1), 'SAME',
                                   dimension_numbers=dn,
                                   precision=lax.Precision.HIGHEST)
    out = out + b2[None, :, None, None]
    return _softplus(out + x_nchw)


if __name__ == "__main__":
    key = jax.random.PRNGKey(0)
    kx, k1, k2, k3, k4 = jax.random.split(key, 5)

    B, C, H, W = 2, 4, 16, 16                  # filters = 4
    x = jax.random.normal(kx, (B, C, H, W), jnp.float32)

    # Deterministic init, shapes match nn.Conv2d(filters, filters, 3, padding=1).
    fan_in = C * 3 * 3
    bound = 1.0 / (fan_in ** 0.5)
    w1 = jax.random.uniform(k1, (C, C, 3, 3), jnp.float32, -bound, bound)
    b1 = jax.random.uniform(k2, (C,), jnp.float32, -bound, bound)
    w2 = jax.random.uniform(k3, (C, C, 3, 3), jnp.float32, -bound, bound)
    b2 = jax.random.uniform(k4, (C,), jnp.float32, -bound, bound)

    out = jax.block_until_ready(residual_block_pallas(x, w1, b1, w2, b2))
    ref = residual_block_ref(x, w1, b1, w2, b2)

    assert out.shape == (B, C, H, W), out.shape
    max_err = float(jnp.max(jnp.abs(out - ref)))
    assert jnp.allclose(out, ref, atol=1e-4, rtol=1e-4), f"max_err={max_err}"
    print("KERNEL_OK")
</pallas_src>

<mosaic_0001>
module attributes {stable_mosaic.version = 11 : i64} {
  func.func @_resblock_kernel(%arg0: memref<8x256xf32, #tpu.memory_space<vmem>>, %arg1: memref<2x8x73xf32, #tpu.memory_space<vmem>>, %arg2: memref<8x256xf32, #tpu.memory_space<vmem>>) attributes {dimension_semantics = [], scalar_prefetch = 0 : i64, scratch_operands = 0 : i64, tpu.core_type = #tpu.core_type<tc>} {
    %c0 = arith.constant 0 : index
    %c0_0 = arith.constant 0 : index
    %0 = vector.load %arg0[%c0, %c0_0] : memref<8x256xf32, #tpu.memory_space<vmem>>, vector<8x256xf32>
    %1 = tpu.iota {dimensions = array<i32: 1>} : vector<8x256xi32>
    %c15_i32 = arith.constant 15 : i32
    %2 = vector.broadcast %c15_i32 : i32 to vector<8x256xi32>
    %3 = arith.andi %1, %2 : vector<8x256xi32>
    %c16_i32 = arith.constant 16 : i32
    %4 = vector.broadcast %c16_i32 : i32 to vector<8x256xi32>
    %5 = arith.cmpi sge, %1, %4 : vector<8x256xi32>
    %c240_i32 = arith.constant 240 : i32
    %6 = vector.broadcast %c240_i32 : i32 to vector<8x256xi32>
    %7 = arith.cmpi slt, %1, %6 : vector<8x256xi32>
    %c1_i32 = arith.constant 1 : i32
    %8 = vector.broadcast %c1_i32 : i32 to vector<8x256xi32>
    %9 = arith.cmpi sge, %3, %8 : vector<8x256xi32>
    %c15_i32_1 = arith.constant 15 : i32
    %10 = vector.broadcast %c15_i32_1 : i32 to vector<8x256xi32>
    %11 = arith.cmpi slt, %3, %10 : vector<8x256xi32>
    %12 = arith.andi %5, %9 : vector<8x256xi1>
    %13 = arith.andi %5, %11 : vector<8x256xi1>
    %14 = arith.andi %7, %9 : vector<8x256xi1>
    %15 = arith.andi %7, %11 : vector<8x256xi1>
    %cst = arith.constant 1.000000e+00 : f32
    %16 = vector.broadcast %cst : f32 to vector<1x256xf32>
    %c0_2 = arith.constant 0 : index
    %c0_3 = arith.constant 0 : index
    %c0_4 = arith.constant 0 : index
    %17 = vector.load %arg1[%c0_2, %c0_3, %c0_4] : memref<2x8x73xf32, #tpu.memory_space<vmem>>, vector<1x8x73xf32>
    %18 = vector.shape_cast %17 : vector<1x8x73xf32> to vector<8x73xf32>
    %c17_i32 = arith.constant 17 : i32
    %19 = tpu.dynamic_rotate %0 by %c17_i32 dim 1 : vector<8x256xf32>, i32 -> vector<8x256xf32>
    %cst_5 = arith.constant 0.000000e+00 : f32
    %20 = vector.broadcast %cst_5 : f32 to vector<8x256xf32>
    %21 = arith.select %12, %19, %20 : vector<8x256xi1>, vector<8x256xf32>
    %c16_i32_6 = arith.constant 16 : i32
    %22 = tpu.dynamic_rotate %0 by %c16_i32_6 dim 1 : vector<8x256xf32>, i32 -> vector<8x256xf32>
    %cst_7 = arith.constant 0.000000e+00 : f32
    %23 = vector.broadcast %cst_7 : f32 to vector<8x256xf32>
    %24 = arith.select %5, %22, %23 : vector<8x256xi1>, vector<8x256xf32>
    %c15_i32_8 = arith.constant 15 : i32
    %25 = tpu.dynamic_rotate %0 by %c15_i32_8 dim 1 : vector<8x256xf32>, i32 -> vector<8x256xf32>
    %cst_9 = arith.constant 0.000000e+00 : f32
    %26 = vector.broadcast %cst_9 : f32 to vector<8x256xf32>
    %27 = arith.select %13, %25, %26 : vector<8x256xi1>, vector<8x256xf32>
    %c1_i32_10 = arith.constant 1 : i32
    %28 = tpu.dynamic_rotate %0 by %c1_i32_10 dim 1 : vector<8x256xf32>, i32 -> vector<8x256xf32>
    %cst_11 = arith.constant 0.000000e+00 : f32
    %29 = vector.broadcast %cst_11 : f32 to vector<8x256xf32>
    %30 = arith.select %9, %28, %29 : vector<8x256xi1>, vector<8x256xf32>
    %c255_i32 = arith.constant 255 : i32
    %31 = tpu.dynamic_rotate %0 by %c255_i32 dim 1 : vector<8x256xf32>, i32 -> vector<8x256xf32>
    %cst_12 = arith.constant 0.000000e+00 : f32
    %32 = vector.broadcast %cst_12 : f32 to vector<8x256xf32>
    %33 = arith.select %11, %31, %32 : vector<8x256xi1>, vector<8x256xf32>
    %c241_i32 = arith.constant 241 : i32
    %34 = tpu.dynamic_rotate %0 by %c241_i32 dim 1 : vector<8x256xf32>, i32 -> vector<8x256xf32>
    %cst_13 = arith.constant 0.000000e+00 : f32
    %35 = vector.broadcast %cst_13 : f32 to vector<8x256xf32>
    %36 = arith.select %14, %34, %35 : vector<8x256xi1>, vector<8x256xf32>
    %c240_i32_14 = arith.constant 240 : i32
    %37 = tpu.dynamic_rotate %0 by %c240_i32_14 dim 1 : vector<8x256xf32>, i32 -> vector<8x256xf32>
    %cst_15 = arith.constant 0.000000e+00 : f32
    %38 = vector.broadcast %cst_15 : f32 to vector<8x256xf32>
    %39 = arith.select %7, %37, %38 : vector<8x256xi1>, vector<8x256xf32>
    %c239_i32 = arith.constant 239 : i32
    %40 = tpu.dynamic_rotate %0 by %c239_i32 dim 1 : vector<8x256xf32>, i32 -> vector<8x256xf32>
    %cst_16 = arith.constant 0.000000e+00 : f32
    %41 = vector.broadcast %cst_16 : f32 to vector<8x256xf32>
    %42 = arith.select %15, %40, %41 : vector<8x256xi1>, vector<8x256xf32>
    %43 = tpu.concatenate %21, %24, %27, %30, %0, %33, %36, %39, %42, %16 in 0 : vector<8x256xf32>, vector<8x256xf32>, vector<8x256xf32>, vector<8x256xf32>, vector<8x256xf32>, vector<8x256xf32>, vector<8x256xf32>, vector<8x256xf32>, vector<8x256xf32>, vector<1x256xf32> -> vector<73x256xf32>
    %cst_17 = arith.constant dense<0.000000e+00> : vector<8x256xf32>
    %44 = tpu.matmul %18, %43, %cst_17 {dimension_numbers = #tpu.dot_dimension_numbers<[1], [0], [0], [1], [0, 0, 1, 1], [], []>, precision = #tpu.contract_precision<fp32>} : vector<8x73xf32>, vector<73x256xf32>, vector<8x256xf32> -> vector<8x256xf32>
    %cst_18 = arith.constant 2.000000e+01 : f32
    %45 = vector.broadcast %cst_18 : f32 to vector<8x256xf32>
    %46 = arith.cmpf ogt, %44, %45 : vector<8x256xf32>
    %cst_19 = arith.constant 2.000000e+01 : f32
    %47 = vector.broadcast %cst_19 : f32 to vector<8x256xf32>
    %48 = arith.minimumf %44, %47 : vector<8x256xf32>
    %49 = math.exp %48 : vector<8x256xf32>
    %cst_20 = arith.constant 1.000000e+00 : f32
    %50 = vector.broadcast %cst_20 : f32 to vector<8x256xf32>
    %51 = arith.addf %50, %49 : vector<8x256xf32>
    %52 = math.log %51 : vector<8x256xf32>
    %53 = arith.select %46, %44, %52 : vector<8x256xi1>, vector<8x256xf32>
    %c1 = arith.constant 1 : index
    %c0_21 = arith.constant 0 : index
    %c0_22 = arith.constant 0 : index
    %54 = vector.load %arg1[%c1, %c0_21, %c0_22] : memref<2x8x73xf32, #tpu.memory_space<vmem>>, vector<1x8x73xf32>
    %55 = vector.shape_cast %54 : vector<1x8x73xf32> to vector<8x73xf32>
    %c17_i32_23 = arith.constant 17 : i32
    %56 = tpu.dynamic_rotate %53 by %c17_i32_23 dim 1 : vector<8x256xf32>, i32 -> vector<8x256xf32>
    %cst_24 = arith.constant 0.000000e+00 : f32
    %57 = vector.broadcast %cst_24 : f32 to vector<8x256xf32>
    %58 = arith.select %12, %56, %57 : vector<8x256xi1>, vector<8x256xf32>
    %c16_i32_25 = arith.constant 16 : i32
    %59 = tpu.dynamic_rotate %53 by %c16_i32_25 dim 1 : vector<8x256xf32>, i32 -> vector<8x256xf32>
    %cst_26 = arith.constant 0.000000e+00 : f32
    %60 = vector.broadcast %cst_26 : f32 to vector<8x256xf32>
    %61 = arith.select %5, %59, %60 : vector<8x256xi1>, vector<8x256xf32>
    %c15_i32_27 = arith.constant 15 : i32
    %62 = tpu.dynamic_rotate %53 by %c15_i32_27 dim 1 : vector<8x256xf32>, i32 -> vector<8x256xf32>
    %cst_28 = arith.constant 0.000000e+00 : f32
    %63 = vector.broadcast %cst_28 : f32 to vector<8x256xf32>
    %64 = arith.select %13, %62, %63 : vector<8x256xi1>, vector<8x256xf32>
    %c1_i32_29 = arith.constant 1 : i32
    %65 = tpu.dynamic_rotate %53 by %c1_i32_29 dim 1 : vector<8x256xf32>, i32 -> vector<8x256xf32>
    %cst_30 = arith.constant 0.000000e+00 : f32
    %66 = vector.broadcast %cst_30 : f32 to vector<8x256xf32>
    %67 = arith.select %9, %65, %66 : vector<8x256xi1>, vector<8x256xf32>
    %c255_i32_31 = arith.constant 255 : i32
    %68 = tpu.dynamic_rotate %53 by %c255_i32_31 dim 1 : vector<8x256xf32>, i32 -> vector<8x256xf32>
    %cst_32 = arith.constant 0.000000e+00 : f32
    %69 = vector.broadcast %cst_32 : f32 to vector<8x256xf32>
    %70 = arith.select %11, %68, %69 : vector<8x256xi1>, vector<8x256xf32>
    %c241_i32_33 = arith.constant 241 : i32
    %71 = tpu.dynamic_rotate %53 by %c241_i32_33 dim 1 : vector<8x256xf32>, i32 -> vector<8x256xf32>
    %cst_34 = arith.constant 0.000000e+00 : f32
    %72 = vector.broadcast %cst_34 : f32 to vector<8x256xf32>
    %73 = arith.select %14, %71, %72 : vector<8x256xi1>, vector<8x256xf32>
    %c240_i32_35 = arith.constant 240 : i32
    %74 = tpu.dynamic_rotate %53 by %c240_i32_35 dim 1 : vector<8x256xf32>, i32 -> vector<8x256xf32>
    %cst_36 = arith.constant 0.000000e+00 : f32
    %75 = vector.broadcast %cst_36 : f32 to vector<8x256xf32>
    %76 = arith.select %7, %74, %75 : vector<8x256xi1>, vector<8x256xf32>
    %c239_i32_37 = arith.constant 239 : i32
    %77 = tpu.dynamic_rotate %53 by %c239_i32_37 dim 1 : vector<8x256xf32>, i32 -> vector<8x256xf32>
    %cst_38 = arith.constant 0.000000e+00 : f32
    %78 = vector.broadcast %cst_38 : f32 to vector<8x256xf32>
    %79 = arith.select %15, %77, %78 : vector<8x256xi1>, vector<8x256xf32>
    %80 = tpu.concatenate %58, %61, %64, %67, %53, %70, %73, %76, %79, %16 in 0 : vector<8x256xf32>, vector<8x256xf32>, vector<8x256xf32>, vector<8x256xf32>, vector<8x256xf32>, vector<8x256xf32>, vector<8x256xf32>, vector<8x256xf32>, vector<8x256xf32>, vector<1x256xf32> -> vector<73x256xf32>
    %cst_39 = arith.constant dense<0.000000e+00> : vector<8x256xf32>
    %81 = tpu.matmul %55, %80, %cst_39 {dimension_numbers = #tpu.dot_dimension_numbers<[1], [0], [0], [1], [0, 0, 1, 1], [], []>, precision = #tpu.contract_precision<fp32>} : vector<8x73xf32>, vector<73x256xf32>, vector<8x256xf32> -> vector<8x256xf32>
    %82 = arith.addf %81, %0 : vector<8x256xf32>
    %cst_40 = arith.constant 2.000000e+01 : f32
    %83 = vector.broadcast %cst_40 : f32 to vector<8x256xf32>
    %84 = arith.cmpf ogt, %82, %83 : vector<8x256xf32>
    %cst_41 = arith.constant 2.000000e+01 : f32
    %85 = vector.broadcast %cst_41 : f32 to vector<8x256xf32>
    %86 = arith.minimumf %82, %85 : vector<8x256xf32>
    %87 = math.exp %86 : vector<8x256xf32>
    %cst_42 = arith.constant 1.000000e+00 : f32
    %88 = vector.broadcast %cst_42 : f32 to vector<8x256xf32>
    %89 = arith.addf %88, %87 : vector<8x256xf32>
    %90 = math.log %89 : vector<8x256xf32>
    %91 = arith.select %84, %82, %90 : vector<8x256xi1>, vector<8x256xf32>
    %c0_43 = arith.constant 0 : index
    %c0_44 = arith.constant 0 : index
    %92 = vector.load %arg2[%c0_43, %c0_44] : memref<8x256xf32, #tpu.memory_space<vmem>>, vector<8x256xf32>
    tpu.vector_store %arg2[%c0_43, %c0_44], %91 {strides = array<i32>} : memref<8x256xf32, #tpu.memory_space<vmem>>, vector<8x256xf32>,
    return
  }
}

</mosaic_0001>

<llo_original>
// kernel: tpu_custom_call.1
$region0: #{tpu_custom_call.1}
  #allocation0 [shape = 'u32[]', space=smem, size = 0x4, offset = 0x4, fixed_abs, tag = 'smem constant byte address 0x4 - core index']
  #allocation1 [shape = 'u32[144,128]{1,0:T(1,128)}', space=vmem, size = 0x12000, scoped, tag = 'internal scratch']
  %s0 = inlined_call_operand.hbm [shape: f32[8,256], index: 0, kind: input, shape index: {}]
  %s1 = inlined_call_operand.hbm [shape: f32[2,8,73], index: 1, kind: input, shape index: {}]
  %s2 = inlined_call_operand.hbm [shape: f32[8,256], index: 2, kind: output, shape index: {}]
  %s3 = sld [smem:[#allocation0]]
  $region26: #{tpu_custom_call.1} parent=0
    _
  %s5 = ssub.s32 1, %s3
  %s6 = scalar_select 0, %s5, %s3
  $region1: #{tpu_custom_call.1} parent=0
    #allocation2 [shape = 'u8[8192]{0}', space=vmem, size = 0x2000, scoped, tag = 'input window, operand 0, single buffered']
    #allocation3 [shape = 's32[1]{0}', space=sflag, size = 0x4, scoped, tag = 'scoped memory for tpu_custom_call.1']
    #allocation4 [shape = 's32[1]{0}', space=sflag, size = 0x4, scoped, tag = 'scoped memory for tpu_custom_call.1']
    #allocation5 [shape = 'u8[8192]{0}', space=vmem, size = 0x2000, scoped, tag = 'input window, operand 1, single buffered']
    #allocation6 [shape = 's32[1]{0}', space=sflag, size = 0x4, scoped, tag = 'scoped memory for tpu_custom_call.1']
    #allocation7 [shape = 'u8[8192]{0}', space=vmem, size = 0x2000, scoped, tag = 'output window, operand 0, single buffered']
    %7 = vsyncpa [#allocation3], 0
    %8 = vsyncpa [#allocation6], 0
    %9 = vsyncpa [#allocation4], 0
    // Predicated region
    $region2: #{tpu_custom_call.1} parent=1 // pred_check
      _
    $region3: #{tpu_custom_call.1} parent=1 // pred_check_branch
      %11 = sbr.rel (0) target = $region5
    $region4: #{tpu_custom_call.1} parent=1 // pred_region
      %s13 = ssub.s32 256, 256
      %14 = vsyncadd [#allocation3], %s13
      %s16 = sshll.u32 [#allocation2], 4
      %s17 = int_to_ptr.vmem [resolvable:$true] %s16
      %19 = dma.hbm_to_vmem [thread:$0]  %s0, 256, %s17, [#allocation3]
    $region5: #{tpu_custom_call.1} parent=1 // pred_fallthru
      _
    // Predicated region
    $region6: #{tpu_custom_call.1} parent=1 // pred_check
      _
    $region7: #{tpu_custom_call.1} parent=1 // pred_check_branch
      %21 = sbr.rel (0) target = $region9
    $region8: #{tpu_custom_call.1} parent=1 // pred_region
      %s23 = ssub.s32 256, 256
      %24 = vsyncadd [#allocation6], %s23
      %s25 = sshll.u32 [#allocation5], 4
      %s26 = int_to_ptr.vmem [resolvable:$true] %s25
      %31 = dma.hbm_to_vmem [thread:$0]  %s1, 256, %s26, [#allocation6], 128, 128, 8
    $region9: #{tpu_custom_call.1} parent=1 // pred_fallthru
      _
    // Predicated region
    $region10: #{tpu_custom_call.1} parent=1 // pred_check
      _
    $region11: #{tpu_custom_call.1} parent=1 // pred_check_branch
      %33 = sbr.rel (0) target = $region13
    $region12: #{tpu_custom_call.1} parent=1 // pred_region
      %34 = dma.done [#allocation3], 256
    $region13: #{tpu_custom_call.1} parent=1 // pred_fallthru
      _
    // Predicated region
    $region14: #{tpu_custom_call.1} parent=1 // pred_check
      _
    $region15: #{tpu_custom_call.1} parent=1 // pred_check_branch
      %36 = sbr.rel (0) target = $region17
    $region16: #{tpu_custom_call.1} parent=1 // pred_region
      %37 = dma.done [#allocation6], 256
    $region17: #{tpu_custom_call.1} parent=1 // pred_fallthru
      _
    %v38 = vld [vmem:[#allocation2] sm:$0xff]
    %v39 = vld [vmem:[#allocation2 + $0x8] sm:$0xff]
    %v40 = vlaneseq
    %v41 = vand.u32 %v40, 127
    %v42 = vadd.s32 %v41, 128
    %v43 = vand.u32 %v41, 15
    %v44 = vand.u32 %v42, 15
    %vm45 = vcmp.ge.s32.totalorder %v41, 16
    %vm46 = vcmp.ge.s32.totalorder %v42, 16
    %vm47 = vcmp.lt.s32.totalorder %v41, 240
    %vm48 = vcmp.lt.s32.totalorder %v42, 240
    %vm49 = vcmp.ge.s32.totalorder %v43, 1
    %vm50 = vcmp.ge.s32.totalorder %v44, 1
    %vm51 = vcmp.lt.s32.totalorder %v43, 15
    %vm52 = vcmp.lt.s32.totalorder %v44, 15
    %vm53 = vmand %vm45, %vm49
    %vm54 = vmand %vm46, %vm50
    %vm55 = vmand %vm45, %vm51
    %vm56 = vmand %vm46, %vm52
    %vm57 = vmand %vm47, %vm49
    %vm58 = vmand %vm48, %vm50
    %vm59 = vmand %vm47, %vm51
    %vm60 = vmand %vm48, %vm52
    %v61 = vld [vmem:[#allocation5] sm:$0xff]
    %62 = vrot.lane.b32.xlu0 %v38, 17
    %v63 = vpop.permute.xlu0 %62
    %64 = vrot.lane.b32.xlu0 %v39, 17
    %v65 = vpop.permute.xlu0 %64
    %vm66 = vcmp.lt.s32.totalorder %v41, 17
    %v67 = vsel %vm66, %v63, %v65
    %v68 = vsel %vm66, %v65, %v63
    %v69 = vsel %vm53, %v68, 0.0
    %v70 = vsel %vm54, %v67, 0.0
    %71 = vrot.lane.b32.xlu0 %v38, 16
    %v72 = vpop.permute.xlu0 %71
    %73 = vrot.lane.b32.xlu0 %v39, 16
    %v74 = vpop.permute.xlu0 %73
    %vm75 = vcmp.lt.s32.totalorder %v41, 16
    %v76 = vsel %vm75, %v72, %v74
    %v77 = vsel %vm75, %v74, %v72
    %v78 = vsel %vm45, %v77, 0.0
    %v79 = vsel %vm46, %v76, 0.0
    %80 = vrot.lane.b32.xlu0 %v38, 15
    %v81 = vpop.permute.xlu0 %80
    %82 = vrot.lane.b32.xlu0 %v39, 15
    %v83 = vpop.permute.xlu0 %82
    %vm84 = vcmp.lt.s32.totalorder %v41, 15
    %v85 = vsel %vm84, %v81, %v83
    %v86 = vsel %vm84, %v83, %v81
    %v87 = vsel %vm55, %v86, 0.0
    %v88 = vsel %vm56, %v85, 0.0
    %89 = vrot.lane.b32.xlu0 %v38, 1
    %v90 = vpop.permute.xlu0 %89
    %91 = vrot.lane.b32.xlu0 %v39, 1
    %v92 = vpop.permute.xlu0 %91
    %vm93 = vcmp.lt.s32.totalorder %v41, 1
    %v94 = vsel %vm93, %v90, %v92
    %v95 = vsel %vm93, %v92, %v90
    %v96 = vsel %vm49, %v95, 0.0
    %v97 = vsel %vm50, %v94, 0.0
    %98 = vrot.lane.b32.xlu0 %v38, 127
    %v99 = vpop.permute.xlu0 %98
    %100 = vrot.lane.b32.xlu0 %v39, 127
    %v101 = vpop.permute.xlu0 %100
    %vm102 = vcmp.lt.s32.totalorder %v41, 127
    %v103 = vsel %vm102, %v99, %v101
    %v104 = vsel %vm102, %v101, %v99
    %v105 = vsel %vm51, %v103, 0.0
    %v106 = vsel %vm52, %v104, 0.0
    %107 = vrot.lane.b32.xlu0 %v38, 113
    %v108 = vpop.permute.xlu0 %107
    %109 = vrot.lane.b32.xlu0 %v39, 113
    %v110 = vpop.permute.xlu0 %109
    %vm111 = vcmp.lt.s32.totalorder %v41, 113
    %v112 = vsel %vm111, %v108, %v110
    %v113 = vsel %vm111, %v110, %v108
    %v114 = vsel %vm57, %v112, 0.0
    %v115 = vsel %vm58, %v113, 0.0
    %116 = vrot.lane.b32.xlu0 %v38, 112
    %v117 = vpop.permute.xlu0 %116
    %118 = vrot.lane.b32.xlu0 %v39, 112
    %v119 = vpop.permute.xlu0 %118
    %vm120 = vcmp.lt.s32.totalorder %v41, 112
    %v121 = vsel %vm120, %v117, %v119
    %v122 = vsel %vm120, %v119, %v117
    %v123 = vsel %vm47, %v121, 0.0
    %v124 = vsel %vm48, %v122, 0.0
    %125 = vrot.lane.b32.xlu0 %v38, 111
    %v126 = vpop.permute.xlu0 %125
    %127 = vrot.lane.b32.xlu0 %v39, 111
    %v128 = vpop.permute.xlu0 %127
    %vm129 = vcmp.lt.s32.totalorder %v41, 111
    %v130 = vsel %vm129, %v126, %v128
    %v131 = vsel %vm129, %v128, %v126
    %v132 = vsel %vm59, %v130, 0.0
    %v133 = vsel %vm60, %v131, 0.0
    %vm134 = vcmask 596992
    %v136 = vsel %vm134, %v61, 0
    %vm138 = vcmask 1040384
    %v140 = vsel %vm138, 1.0, 0
    %142 = vmatprep.subr.mxu0 0.0
    %143 = vmatpush1.msra.mxu0 0.0
    %144 = vmatprep.subr.mxu0 0.0
    %145 = vmatpush1.msra.mxu0 0.0
    %146 = vmatprep.subr.mxu0 0.0
    %147 = vmatpush1.msra.mxu0 0.0
    %148 = vmatprep.subr.mxu0 0.0
    %149 = vmatpush1.msra.mxu0 0.0
    %150 = vmatprep.subr.mxu0 0.0
    %151 = vmatpush1.msra.mxu0 0.0
    %152 = vmatprep.subr.mxu0 0.0
    %153 = vmatpush1.msra.mxu0 0.0
    %v154 = vand.u32 %v140, 4294901760
    %155 = vmatprep.subr.mxu0 %v154
    %v156 = vand.u32 %v140, 4294901760
    %157 = vmatpush1.msra.mxu0 %v156
    %v158 = vand.u32 %v133, 4294901760
    %159 = vmatprep.subr.mxu0 %v158
    %v160 = vand.u32 %v132, 4294901760
    %161 = vmatpush1.msra.mxu0 %v160
    %v162 = vand.u32 %v124, 4294901760
    %163 = vmatprep.subr.mxu0 %v162
    %v164 = vand.u32 %v123, 4294901760
    %165 = vmatpush1.msra.mxu0 %v164
    %v166 = vand.u32 %v115, 4294901760
    %167 = vmatprep.subr.mxu0 %v166
    %v168 = vand.u32 %v114, 4294901760
    %169 = vmatpush1.msra.mxu0 %v168
    %v170 = vand.u32 %v106, 4294901760
    %171 = vmatprep.subr.mxu0 %v170
    %v172 = vand.u32 %v105, 4294901760
    %173 = vmatpush1.msra.mxu0 %v172
    %v174 = vand.u32 %v39, 4294901760
    %175 = vmatprep.subr.mxu0 %v174
    %v176 = vand.u32 %v38, 4294901760
    %177 = vmatpush1.msra.mxu0 %v176
    %v178 = vand.u32 %v97, 4294901760
    %179 = vmatprep.subr.mxu0 %v178
    %v180 = vand.u32 %v96, 4294901760
    %181 = vmatpush1.msra.mxu0 %v180
    %v182 = vand.u32 %v88, 4294901760
    %183 = vmatprep.subr.mxu0 %v182
    %v184 = vand.u32 %v87, 4294901760
    %185 = vmatpush1.msra.mxu0 %v184
    %v186 = vand.u32 %v79, 4294901760
    %187 = vmatprep.subr.mxu0 %v186
    %v188 = vand.u32 %v78, 4294901760
    %189 = vmatpush1.msra.mxu0 %v188
    %v190 = vand.u32 %v70, 4294901760
    %191 = vmatprep.subr.mxu0 %v190
    %v192 = vand.u32 %v69, 4294901760
    %193 = vmatpush1.msra.mxu0 %v192
    %194 = vmatprep.subr.mxu0 0.0
    %195 = vmatpush2.msra.mxu0 0.0
    %196 = vmatprep.subr.mxu0 0.0
    %197 = vmatpush2.msra.mxu0 0.0
    %198 = vmatprep.subr.mxu0 0.0
    %199 = vmatpush2.msra.mxu0 0.0
    %200 = vmatprep.subr.mxu0 0.0
    %201 = vmatpush2.msra.mxu0 0.0
    %202 = vmatprep.subr.mxu0 0.0
    %203 = vmatpush2.msra.mxu0 0.0
    %204 = vmatprep.subr.mxu0 0.0
    %205 = vmatpush2.msra.mxu0 0.0
    %206 = vmatprep.subr.mxu0 0.0
    %207 = vmatpush2.msra.mxu0 0.0
    %208 = vmatprep.subr.mxu0 0.0
    %209 = vmatpush2.msra.mxu0 0.0
    %210 = vmatprep.subr.mxu0 0.0
    %211 = vmatpush2.msra.mxu0 0.0
    %212 = vmatprep.subr.mxu0 0.0
    %213 = vmatpush2.msra.mxu0 0.0
    %214 = vmatprep.subr.mxu0 0.0
    %215 = vmatpush2.msra.mxu0 0.0
    %216 = vmatprep.subr.mxu0 0.0
    %217 = vmatpush2.msra.mxu0 0.0
    %218 = vmatprep.subr.mxu0 0.0
    %219 = vmatpush2.msra.mxu0 0.0
    %220 = vmatprep.subr.mxu0 0.0
    %221 = vmatpush2.msra.mxu0 0.0
    %222 = vmatprep.subr.mxu0 0.0
    %223 = vmatpush2.msra.mxu0 0.0
    %224 = vmatprep.subr.mxu0 0.0
    %225 = vmatpush2.msra.mxu0 0.0
    %226 = vmatprep.mubr.f32.mxu0 0.0
    %v227 = vand.u32 %v136, 4294901760
    %v228 = vsub.f32 %v136, %v227
    %v229 = vand.u32 %v228, 4294901760
    %v230 = vsub.f32 %v228, %v229
    %v231 = vand.u32 %v230, 4294901760
    %232 = vmatmul.mubr.f32.gmra.mxu0 %v231
    %v233 = vpop.f32.mrf.mxu0
    %v234 = vadd.f32 0.0, %v233
    %v235 = vpop.f32.mrf.mxu0
    %v236 = vadd.f32 0.0, %v235
    %237 = vdwg.mxu0
    %238 = vmatprep.subr.mxu0 0.0
    %239 = vmatpush1.msra.mxu0 0.0
    %240 = vmatprep.subr.mxu0 0.0
    %241 = vmatpush1.msra.mxu0 0.0
    %242 = vmatprep.subr.mxu0 0.0
    %243 = vmatpush1.msra.mxu0 0.0
    %244 = vmatprep.subr.mxu0 0.0
    %245 = vmatpush1.msra.mxu0 0.0
    %246 = vmatprep.subr.mxu0 0.0
    %247 = vmatpush1.msra.mxu0 0.0
    %248 = vmatprep.subr.mxu0 0.0
    %249 = vmatpush1.msra.mxu0 0.0
    %v250 = vand.u32 %v140, 4294901760
    %v251 = vsub.f32 %v140, %v250
    %v252 = vand.u32 %v251, 4294901760
    %v253 = vsub.f32 %v251, %v252
    %v254 = vand.u32 %v253, 4294901760
    %255 = vmatprep.subr.mxu0 %v254
    %v256 = vand.u32 %v140, 4294901760
    %v257 = vsub.f32 %v140, %v256
    %v258 = vand.u32 %v257, 4294901760
    %v259 = vsub.f32 %v257, %v258
    %v260 = vand.u32 %v259, 4294901760
    %261 = vmatpush1.msra.mxu0 %v260
    %v262 = vand.u32 %v133, 4294901760
    %v263 = vsub.f32 %v133, %v262
    %v264 = vand.u32 %v263, 4294901760
    %v265 = vsub.f32 %v263, %v264
    %v266 = vand.u32 %v265, 4294901760
    %267 = vmatprep.subr.mxu0 %v266
    %v268 = vand.u32 %v132, 4294901760
    %v269 = vsub.f32 %v132, %v268
    %v270 = vand.u32 %v269, 4294901760
    %v271 = vsub.f32 %v269, %v270
    %v272 = vand.u32 %v271, 4294901760
    %273 = vmatpush1.msra.mxu0 %v272
    %v274 = vand.u32 %v124, 4294901760
    %v275 = vsub.f32 %v124, %v274
    %v276 = vand.u32 %v275, 4294901760
    %v277 = vsub.f32 %v275, %v276
    %v278 = vand.u32 %v277, 4294901760
    %279 = vmatprep.subr.mxu0 %v278
    %v280 = vand.u32 %v123, 4294901760
    %v281 = vsub.f32 %v123, %v280
    %v282 = vand.u32 %v281, 4294901760
    %v283 = vsub.f32 %v281, %v282
    %v284 = vand.u32 %v283, 4294901760
    %285 = vmatpush1.msra.mxu0 %v284
    %v286 = vand.u32 %v115, 4294901760
    %v287 = vsub.f32 %v115, %v286
    %v288 = vand.u32 %v287, 4294901760
    %v289 = vsub.f32 %v287, %v288
    %v290 = vand.u32 %v289, 4294901760
    %291 = vmatprep.subr.mxu0 %v290
    %v292 = vand.u32 %v114, 4294901760
    %v293 = vsub.f32 %v114, %v292
    %v294 = vand.u32 %v293, 4294901760
    %v295 = vsub.f32 %v293, %v294
    %v296 = vand.u32 %v295, 4294901760
    %297 = vmatpush1.msra.mxu0 %v296
    %v298 = vand.u32 %v106, 4294901760
    %v299 = vsub.f32 %v106, %v298
    %v300 = vand.u32 %v299, 4294901760
    %v301 = vsub.f32 %v299, %v300
    %v302 = vand.u32 %v301, 4294901760
    %303 = vmatprep.subr.mxu0 %v302
    %v304 = vand.u32 %v105, 4294901760
    %v305 = vsub.f32 %v105, %v304
    %v306 = vand.u32 %v305, 4294901760
    %v307 = vsub.f32 %v305, %v306
    %v308 = vand.u32 %v307, 4294901760
    %309 = vmatpush1.msra.mxu0 %v308
    %v310 = vand.u32 %v39, 4294901760
    %v311 = vsub.f32 %v39, %v310
    %v312 = vand.u32 %v311, 4294901760
    %v313 = vsub.f32 %v311, %v312
    %v314 = vand.u32 %v313, 4294901760
    %315 = vmatprep.subr.mxu0 %v314
    %v316 = vand.u32 %v38, 4294901760
    %v317 = vsub.f32 %v38, %v316
    %v318 = vand.u32 %v317, 4294901760
    %v319 = vsub.f32 %v317, %v318
    %v320 = vand.u32 %v319, 4294901760
    %321 = vmatpush1.msra.mxu0 %v320
    %v322 = vand.u32 %v97, 4294901760
    %v323 = vsub.f32 %v97, %v322
    %v324 = vand.u32 %v323, 4294901760
    %v325 = vsub.f32 %v323, %v324
    %v326 = vand.u32 %v325, 4294901760
    %327 = vmatprep.subr.mxu0 %v326
    %v328 = vand.u32 %v96, 4294901760
    %v329 = vsub.f32 %v96, %v328
    %v330 = vand.u32 %v329, 4294901760
    %v331 = vsub.f32 %v329, %v330
    %v332 = vand.u32 %v331, 4294901760
    %333 = vmatpush1.msra.mxu0 %v332
    %v334 = vand.u32 %v88, 4294901760
    %v335 = vsub.f32 %v88, %v334
    %v336 = vand.u32 %v335, 4294901760
    %v337 = vsub.f32 %v335, %v336
    %v338 = vand.u32 %v337, 4294901760
    %339 = vmatprep.subr.mxu0 %v338
    %v340 = vand.u32 %v87, 4294901760
    %v341 = vsub.f32 %v87, %v340
    %v342 = vand.u32 %v341, 4294901760
    %v343 = vsub.f32 %v341, %v342
    %v344 = vand.u32 %v343, 4294901760
    %345 = vmatpush1.msra.mxu0 %v344
    %v346 = vand.u32 %v79, 4294901760
    %v347 = vsub.f32 %v79, %v346
    %v348 = vand.u32 %v347, 4294901760
    %v349 = vsub.f32 %v347, %v348
    %v350 = vand.u32 %v349, 4294901760
    %351 = vmatprep.subr.mxu0 %v350
    %v352 = vand.u32 %v78, 4294901760
    %v353 = vsub.f32 %v78, %v352
    %v354 = vand.u32 %v353, 4294901760
    %v355 = vsub.f32 %v353, %v354
    %v356 = vand.u32 %v355, 4294901760
    %357 = vmatpush1.msra.mxu0 %v356
    %v358 = vand.u32 %v70, 4294901760
    %v359 = vsub.f32 %v70, %v358
    %v360 = vand.u32 %v359, 4294901760
    %v361 = vsub.f32 %v359, %v360
    %v362 = vand.u32 %v361, 4294901760
    %363 = vmatprep.subr.mxu0 %v362
    %v364 = vand.u32 %v69, 4294901760
    %v365 = vsub.f32 %v69, %v364
    %v366 = vand.u32 %v365, 4294901760
    %v367 = vsub.f32 %v365, %v366
    %v368 = vand.u32 %v367, 4294901760
    %369 = vmatpush1.msra.mxu0 %v368
    %370 = vmatprep.subr.mxu0 0.0
    %371 = vmatpush2.msra.mxu0 0.0
    %372 = vmatprep.subr.mxu0 0.0
    %373 = vmatpush2.msra.mxu0 0.0
    %374 = vmatprep.subr.mxu0 0.0
    %375 = vmatpush2.msra.mxu0 0.0
    %376 = vmatprep.subr.mxu0 0.0
    %377 = vmatpush2.msra.mxu0 0.0
    %378 = vmatprep.subr.mxu0 0.0
    %379 = vmatpush2.msra.mxu0 0.0
    %380 = vmatprep.subr.mxu0 0.0
    %381 = vmatpush2.msra.mxu0 0.0
    %382 = vmatprep.subr.mxu0 0.0
    %383 = vmatpush2.msra.mxu0 0.0
    %384 = vmatprep.subr.mxu0 0.0
    %385 = vmatpush2.msra.mxu0 0.0
    %386 = vmatprep.subr.mxu0 0.0
    %387 = vmatpush2.msra.mxu0 0.0
    %388 = vmatprep.subr.mxu0 0.0
    %389 = vmatpush2.msra.mxu0 0.0
    %390 = vmatprep.subr.mxu0 0.0
    %391 = vmatpush2.msra.mxu0 0.0
    %392 = vmatprep.subr.mxu0 0.0
    %393 = vmatpush2.msra.mxu0 0.0
    %394 = vmatprep.subr.mxu0 0.0
    %395 = vmatpush2.msra.mxu0 0.0
    %396 = vmatprep.subr.mxu0 0.0
    %397 = vmatpush2.msra.mxu0 0.0
    %398 = vmatprep.subr.mxu0 0.0
    %399 = vmatpush2.msra.mxu0 0.0
    %400 = vmatprep.subr.mxu0 0.0
    %401 = vmatpush2.msra.mxu0 0.0
    %402 = vmatprep.mubr.f32.mxu0 0.0
    %v403 = vand.u32 %v136, 4294901760
    %404 = vmatmul.mubr.f32.gmra.mxu0 %v403
    %v405 = vpop.f32.mrf.mxu0
    %v406 = vadd.f32 %v234, %v405
    %v407 = vpop.f32.mrf.mxu0
    %v408 = vadd.f32 %v236, %v407
    %409 = vdwg.mxu0
    %410 = vmatprep.subr.mxu0 0.0
    %411 = vmatpush1.msra.mxu0 0.0
    %412 = vmatprep.subr.mxu0 0.0
    %413 = vmatpush1.msra.mxu0 0.0
    %414 = vmatprep.subr.mxu0 0.0
    %415 = vmatpush1.msra.mxu0 0.0
    %416 = vmatprep.subr.mxu0 0.0
    %417 = vmatpush1.msra.mxu0 0.0
    %418 = vmatprep.subr.mxu0 0.0
    %419 = vmatpush1.msra.mxu0 0.0
    %420 = vmatprep.subr.mxu0 0.0
    %421 = vmatpush1.msra.mxu0 0.0
    %v422 = vand.u32 %v140, 4294901760
    %v423 = vsub.f32 %v140, %v422
    %424 = vmatprep.subr.mxu0 %v423
    %v425 = vand.u32 %v140, 4294901760
    %v426 = vsub.f32 %v140, %v425
    %427 = vmatpush1.msra.mxu0 %v426
    %v428 = vand.u32 %v133, 4294901760
    %v429 = vsub.f32 %v133, %v428
    %430 = vmatprep.subr.mxu0 %v429
    %v431 = vand.u32 %v132, 4294901760
    %v432 = vsub.f32 %v132, %v431
    %433 = vmatpush1.msra.mxu0 %v432
    %v434 = vand.u32 %v124, 4294901760
    %v435 = vsub.f32 %v124, %v434
    %436 = vmatprep.subr.mxu0 %v435
    %v437 = vand.u32 %v123, 4294901760
    %v438 = vsub.f32 %v123, %v437
    %439 = vmatpush1.msra.mxu0 %v438
    %v440 = vand.u32 %v115, 4294901760
    %v441 = vsub.f32 %v115, %v440
    %442 = vmatprep.subr.mxu0 %v441
    %v443 = vand.u32 %v114, 4294901760
    %v444 = vsub.f32 %v114, %v443
    %445 = vmatpush1.msra.mxu0 %v444
    %v446 = vand.u32 %v106, 4294901760
    %v447 = vsub.f32 %v106, %v446
    %448 = vmatprep.subr.mxu0 %v447
    %v449 = vand.u32 %v105, 4294901760
    %v450 = vsub.f32 %v105, %v449
    %451 = vmatpush1.msra.mxu0 %v450
    %v452 = vand.u32 %v39, 4294901760
    %v453 = vsub.f32 %v39, %v452
    %454 = vmatprep.subr.mxu0 %v453
    %v455 = vand.u32 %v38, 4294901760
    %v456 = vsub.f32 %v38, %v455
    %457 = vmatpush1.msra.mxu0 %v456
    %v458 = vand.u32 %v97, 4294901760
    %v459 = vsub.f32 %v97, %v458
    %460 = vmatprep.subr.mxu0 %v459
    %v461 = vand.u32 %v96, 4294901760
    %v462 = vsub.f32 %v96, %v461
    %463 = vmatpush1.msra.mxu0 %v462
    %v464 = vand.u32 %v88, 4294901760
    %v465 = vsub.f32 %v88, %v464
    %466 = vmatprep.subr.mxu0 %v465
    %v467 = vand.u32 %v87, 4294901760
    %v468 = vsub.f32 %v87, %v467
    %469 = vmatpush1.msra.mxu0 %v468
    %v470 = vand.u32 %v79, 4294901760
    %v471 = vsub.f32 %v79, %v470
    %472 = vmatprep.subr.mxu0 %v471
    %v473 = vand.u32 %v78, 4294901760
    %v474 = vsub.f32 %v78, %v473
    %475 = vmatpush1.msra.mxu0 %v474
    %v476 = vand.u32 %v70, 4294901760
    %v477 = vsub.f32 %v70, %v476
    %478 = vmatprep.subr.mxu0 %v477
    %v479 = vand.u32 %v69, 4294901760
    %v480 = vsub.f32 %v69, %v479
    %481 = vmatpush1.msra.mxu0 %v480
    %482 = vmatprep.subr.mxu0 0.0
    %483 = vmatpush2.msra.mxu0 0.0
    %484 = vmatprep.subr.mxu0 0.0
    %485 = vmatpush2.msra.mxu0 0.0
    %486 = vmatprep.subr.mxu0 0.0
    %487 = vmatpush2.msra.mxu0 0.0
    %488 = vmatprep.subr.mxu0 0.0
    %489 = vmatpush2.msra.mxu0 0.0
    %490 = vmatprep.subr.mxu0 0.0
    %491 = vmatpush2.msra.mxu0 0.0
    %492 = vmatprep.subr.mxu0 0.0
    %493 = vmatpush2.msra.mxu0 0.0
    %494 = vmatprep.subr.mxu0 0.0
    %495 = vmatpush2.msra.mxu0 0.0
    %496 = vmatprep.subr.mxu0 0.0
    %497 = vmatpush2.msra.mxu0 0.0
    %498 = vmatprep.subr.mxu0 0.0
    %499 = vmatpush2.msra.mxu0 0.0
    %500 = vmatprep.subr.mxu0 0.0
    %501 = vmatpush2.msra.mxu0 0.0
    %502 = vmatprep.subr.mxu0 0.0
    %503 = vmatpush2.msra.mxu0 0.0
    %504 = vmatprep.subr.mxu0 0.0
    %505 = vmatpush2.msra.mxu0 0.0
    %506 = vmatprep.subr.mxu0 0.0
    %507 = vmatpush2.msra.mxu0 0.0
    %508 = vmatprep.subr.mxu0 0.0
    %509 = vmatpush2.msra.mxu0 0.0
    %510 = vmatprep.subr.mxu0 0.0
    %511 = vmatpush2.msra.mxu0 0.0
    %512 = vmatprep.subr.mxu0 0.0
    %513 = vmatpush2.msra.mxu0 0.0
    %514 = vmatprep.mubr.f32.mxu0 0.0
    %v515 = vand.u32 %v136, 4294901760
    %v516 = vsub.f32 %v136, %v515
    %517 = vmatmul.mubr.f32.gmra.mxu0 %v516
    %v518 = vpop.f32.mrf.mxu0
    %v519 = vadd.f32 %v406, %v518
    %v520 = vpop.f32.mrf.mxu0
    %v521 = vadd.f32 %v408, %v520
    %522 = vdwg.mxu0
    %523 = vmatprep.subr.mxu0 0.0
    %524 = vmatpush1.msra.mxu0 0.0
    %525 = vmatprep.subr.mxu0 0.0
    %526 = vmatpush1.msra.mxu0 0.0
    %527 = vmatprep.subr.mxu0 0.0
    %528 = vmatpush1.msra.mxu0 0.0
    %529 = vmatprep.subr.mxu0 0.0
    %530 = vmatpush1.msra.mxu0 0.0
    %531 = vmatprep.subr.mxu0 0.0
    %532 = vmatpush1.msra.mxu0 0.0
    %533 = vmatprep.subr.mxu0 0.0
    %534 = vmatpush1.msra.mxu0 0.0
    %v535 = vand.u32 %v140, 4294901760
    %536 = vmatprep.subr.mxu0 %v535
    %v537 = vand.u32 %v140, 4294901760
    %538 = vmatpush1.msra.mxu0 %v537
    %v539 = vand.u32 %v133, 4294901760
    %540 = vmatprep.subr.mxu0 %v539
    %v541 = vand.u32 %v132, 4294901760
    %542 = vmatpush1.msra.mxu0 %v541
    %v543 = vand.u32 %v124, 4294901760
    %544 = vmatprep.subr.mxu0 %v543
    %v545 = vand.u32 %v123, 4294901760
    %546 = vmatpush1.msra.mxu0 %v545
    %v547 = vand.u32 %v115, 4294901760
    %548 = vmatprep.subr.mxu0 %v547
    %v549 = vand.u32 %v114, 4294901760
    %550 = vmatpush1.msra.mxu0 %v549
    %v551 = vand.u32 %v106, 4294901760
    %552 = vmatprep.subr.mxu0 %v551
    %v553 = vand.u32 %v105, 4294901760
    %554 = vmatpush1.msra.mxu0 %v553
    %v555 = vand.u32 %v39, 4294901760
    %556 = vmatprep.subr.mxu0 %v555
    %v557 = vand.u32 %v38, 4294901760
    %558 = vmatpush1.msra.mxu0 %v557
    %v559 = vand.u32 %v97, 4294901760
    %560 = vmatprep.subr.mxu0 %v559
    %v561 = vand.u32 %v96, 4294901760
    %562 = vmatpush1.msra.mxu0 %v561
    %v563 = vand.u32 %v88, 4294901760
    %564 = vmatprep.subr.mxu0 %v563
    %v565 = vand.u32 %v87, 4294901760
    %566 = vmatpush1.msra.mxu0 %v565
    %v567 = vand.u32 %v79, 4294901760
    %568 = vmatprep.subr.mxu0 %v567
    %v569 = vand.u32 %v78, 4294901760
    %570 = vmatpush1.msra.mxu0 %v569
    %v571 = vand.u32 %v70, 4294901760
    %572 = vmatprep.subr.mxu0 %v571
    %v573 = vand.u32 %v69, 4294901760
    %574 = vmatpush1.msra.mxu0 %v573
    %575 = vmatprep.subr.mxu0 0.0
    %576 = vmatpush2.msra.mxu0 0.0
    %577 = vmatprep.subr.mxu0 0.0
    %578 = vmatpush2.msra.mxu0 0.0
    %579 = vmatprep.subr.mxu0 0.0
    %580 = vmatpush2.msra.mxu0 0.0
    %581 = vmatprep.subr.mxu0 0.0
    %582 = vmatpush2.msra.mxu0 0.0
    %583 = vmatprep.subr.mxu0 0.0
    %584 = vmatpush2.msra.mxu0 0.0
    %585 = vmatprep.subr.mxu0 0.0
    %586 = vmatpush2.msra.mxu0 0.0
    %587 = vmatprep.subr.mxu0 0.0
    %588 = vmatpush2.msra.mxu0 0.0
    %589 = vmatprep.subr.mxu0 0.0
    %590 = vmatpush2.msra.mxu0 0.0
    %591 = vmatprep.subr.mxu0 0.0
    %592 = vmatpush2.msra.mxu0 0.0
    %593 = vmatprep.subr.mxu0 0.0
    %594 = vmatpush2.msra.mxu0 0.0
    %595 = vmatprep.subr.mxu0 0.0
    %596 = vmatpush2.msra.mxu0 0.0
    %597 = vmatprep.subr.mxu0 0.0
    %598 = vmatpush2.msra.mxu0 0.0
    %599 = vmatprep.subr.mxu0 0.0
    %600 = vmatpush2.msra.mxu0 0.0
    %601 = vmatprep.subr.mxu0 0.0
    %602 = vmatpush2.msra.mxu0 0.0
    %603 = vmatprep.subr.mxu0 0.0
    %604 = vmatpush2.msra.mxu0 0.0
    %605 = vmatprep.subr.mxu0 0.0
    %606 = vmatpush2.msra.mxu0 0.0
    %607 = vmatprep.mubr.f32.mxu0 0.0
    %v608 = vand.u32 %v136, 4294901760
    %v609 = vsub.f32 %v136, %v608
    %v610 = vand.u32 %v609, 4294901760
    %611 = vmatmul.mubr.f32.gmra.mxu0 %v610
    %v612 = vpop.f32.mrf.mxu0
    %v613 = vadd.f32 %v519, %v612
    %v614 = vpop.f32.mrf.mxu0
    %v615 = vadd.f32 %v521, %v614
    %616 = vdwg.mxu0
    %617 = vmatprep.subr.mxu0 0.0
    %618 = vmatpush1.msra.mxu0 0.0
    %619 = vmatprep.subr.mxu0 0.0
    %620 = vmatpush1.msra.mxu0 0.0
    %621 = vmatprep.subr.mxu0 0.0
    %622 = vmatpush1.msra.mxu0 0.0
    %623 = vmatprep.subr.mxu0 0.0
    %624 = vmatpush1.msra.mxu0 0.0
    %625 = vmatprep.subr.mxu0 0.0
    %626 = vmatpush1.msra.mxu0 0.0
    %627 = vmatprep.subr.mxu0 0.0
    %628 = vmatpush1.msra.mxu0 0.0
    %v629 = vand.u32 %v140, 4294901760
    %v630 = vsub.f32 %v140, %v629
    %v631 = vand.u32 %v630, 4294901760
    %632 = vmatprep.subr.mxu0 %v631
    %v633 = vand.u32 %v140, 4294901760
    %v634 = vsub.f32 %v140, %v633
    %v635 = vand.u32 %v634, 4294901760
    %636 = vmatpush1.msra.mxu0 %v635
    %v637 = vand.u32 %v133, 4294901760
    %v638 = vsub.f32 %v133, %v637
    %v639 = vand.u32 %v638, 4294901760
    %640 = vmatprep.subr.mxu0 %v639
    %v641 = vand.u32 %v132, 4294901760
    %v642 = vsub.f32 %v132, %v641
    %v643 = vand.u32 %v642, 4294901760
    %644 = vmatpush1.msra.mxu0 %v643
    %v645 = vand.u32 %v124, 4294901760
    %v646 = vsub.f32 %v124, %v645
    %v647 = vand.u32 %v646, 4294901760
    %648 = vmatprep.subr.mxu0 %v647
    %v649 = vand.u32 %v123, 4294901760
    %v650 = vsub.f32 %v123, %v649
    %v651 = vand.u32 %v650, 4294901760
    %652 = vmatpush1.msra.mxu0 %v651
    %v653 = vand.u32 %v115, 4294901760
    %v654 = vsub.f32 %v115, %v653
    %v655 = vand.u32 %v654, 4294901760
    %656 = vmatprep.subr.mxu0 %v655
    %v657 = vand.u32 %v114, 4294901760
    %v658 = vsub.f32 %v114, %v657
    %v659 = vand.u32 %v658, 4294901760
    %660 = vmatpush1.msra.mxu0 %v659
    %v661 = vand.u32 %v106, 4294901760
    %v662 = vsub.f32 %v106, %v661
    %v663 = vand.u32 %v662, 4294901760
    %664 = vmatprep.subr.mxu0 %v663
    %v665 = vand.u32 %v105, 4294901760
    %v666 = vsub.f32 %v105, %v665
    %v667 = vand.u32 %v666, 4294901760
    %668 = vmatpush1.msra.mxu0 %v667
    %v669 = vand.u32 %v39, 4294901760
    %v670 = vsub.f32 %v39, %v669
    %v671 = vand.u32 %v670, 4294901760
    %672 = vmatprep.subr.mxu0 %v671
    %v673 = vand.u32 %v38, 4294901760
    %v674 = vsub.f32 %v38, %v673
    %v675 = vand.u32 %v674, 4294901760
    %676 = vmatpush1.msra.mxu0 %v675
    %v677 = vand.u32 %v97, 4294901760
    %v678 = vsub.f32 %v97, %v677
    %v679 = vand.u32 %v678, 4294901760
    %680 = vmatprep.subr.mxu0 %v679
    %v681 = vand.u32 %v96, 4294901760
    %v682 = vsub.f32 %v96, %v681
    %v683 = vand.u32 %v682, 4294901760
    %684 = vmatpush1.msra.mxu0 %v683
    %v685 = vand.u32 %v88, 4294901760
    %v686 = vsub.f32 %v88, %v685
    %v687 = vand.u32 %v686, 4294901760
    %688 = vmatprep.subr.mxu0 %v687
    %v689 = vand.u32 %v87, 4294901760
    %v690 = vsub.f32 %v87, %v689
    %v691 = vand.u32 %v690, 4294901760
    %692 = vmatpush1.msra.mxu0 %v691
    %v693 = vand.u32 %v79, 4294901760
    %v694 = vsub.f32 %v79, %v693
    %v695 = vand.u32 %v694, 4294901760
    %696 = vmatprep.subr.mxu0 %v695
    %v697 = vand.u32 %v78, 4294901760
    %v698 = vsub.f32 %v78, %v697
    %v699 = vand.u32 %v698, 4294901760
    %700 = vmatpush1.msra.mxu0 %v699
    %v701 = vand.u32 %v70, 4294901760
    %v702 = vsub.f32 %v70, %v701
    %v703 = vand.u32 %v702, 4294901760
    %704 = vmatprep.subr.mxu0 %v703
    %v705 = vand.u32 %v69, 4294901760
    %v706 = vsub.f32 %v69, %v705
    %v707 = vand.u32 %v706, 4294901760
    %708 = vmatpush1.msra.mxu0 %v707
    %709 = vmatprep.subr.mxu0 0.0
    %710 = vmatpush2.msra.mxu0 0.0
    %711 = vmatprep.subr.mxu0 0.0
    %712 = vmatpush2.msra.mxu0 0.0
    %713 = vmatprep.subr.mxu0 0.0
    %714 = vmatpush2.msra.mxu0 0.0
    %715 = vmatprep.subr.mxu0 0.0
    %716 = vmatpush2.msra.mxu0 0.0
    %717 = vmatprep.subr.mxu0 0.0
    %718 = vmatpush2.msra.mxu0 0.0
    %719 = vmatprep.subr.mxu0 0.0
    %720 = vmatpush2.msra.mxu0 0.0
    %721 = vmatprep.subr.mxu0 0.0
    %722 = vmatpush2.msra.mxu0 0.0
    %723 = vmatprep.subr.mxu0 0.0
    %724 = vmatpush2.msra.mxu0 0.0
    %725 = vmatprep.subr.mxu0 0.0
    %726 = vmatpush2.msra.mxu0 0.0
    %727 = vmatprep.subr.mxu0 0.0
    %728 = vmatpush2.msra.mxu0 0.0
    %729 = vmatprep.subr.mxu0 0.0
    %730 = vmatpush2.msra.mxu0 0.0
    %731 = vmatprep.subr.mxu0 0.0
    %732 = vmatpush2.msra.mxu0 0.0
    %733 = vmatprep.subr.mxu0 0.0
    %734 = vmatpush2.msra.mxu0 0.0
    %735 = vmatprep.subr.mxu0 0.0
    %736 = vmatpush2.msra.mxu0 0.0
    %737 = vmatprep.subr.mxu0 0.0
    %738 = vmatpush2.msra.mxu0 0.0
    %739 = vmatprep.subr.mxu0 0.0
    %740 = vmatpush2.msra.mxu0 0.0
    %741 = vmatprep.mubr.f32.mxu0 0.0
    %v742 = vand.u32 %v136, 4294901760
    %743 = vmatmul.mubr.f32.gmra.mxu0 %v742
    %v744 = vpop.f32.mrf.mxu0
    %v745 = vadd.f32 %v613, %v744
    %v746 = vpop.f32.mrf.mxu0
    %v747 = vadd.f32 %v615, %v746
    %748 = vdwg.mxu0
    %749 = vmatprep.subr.mxu0 0.0
    %750 = vmatpush1.msra.mxu0 0.0
    %751 = vmatprep.subr.mxu0 0.0
    %752 = vmatpush1.msra.mxu0 0.0
    %753 = vmatprep.subr.mxu0 0.0
    %754 = vmatpush1.msra.mxu0 0.0
    %755 = vmatprep.subr.mxu0 0.0
    %756 = vmatpush1.msra.mxu0 0.0
    %757 = vmatprep.subr.mxu0 0.0
    %758 = vmatpush1.msra.mxu0 0.0
    %759 = vmatprep.subr.mxu0 0.0
    %760 = vmatpush1.msra.mxu0 0.0
    %v761 = vand.u32 %v140, 4294901760
    %762 = vmatprep.subr.mxu0 %v761
    %v763 = vand.u32 %v140, 4294901760
    %764 = vmatpush1.msra.mxu0 %v763
    %v765 = vand.u32 %v133, 4294901760
    %766 = vmatprep.subr.mxu0 %v765
    %v767 = vand.u32 %v132, 4294901760
    %768 = vmatpush1.msra.mxu0 %v767
    %v769 = vand.u32 %v124, 4294901760
    %770 = vmatprep.subr.mxu0 %v769
    %v771 = vand.u32 %v123, 4294901760
    %772 = vmatpush1.msra.mxu0 %v771
    %v773 = vand.u32 %v115, 4294901760
    %774 = vmatprep.subr.mxu0 %v773
    %v775 = vand.u32 %v114, 4294901760
    %776 = vmatpush1.msra.mxu0 %v775
    %v777 = vand.u32 %v106, 4294901760
    %778 = vmatprep.subr.mxu0 %v777
    %v779 = vand.u32 %v105, 4294901760
    %780 = vmatpush1.msra.mxu0 %v779
    %v781 = vand.u32 %v39, 4294901760
    %782 = vmatprep.subr.mxu0 %v781
    %v783 = vand.u32 %v38, 4294901760
    %784 = vmatpush1.msra.mxu0 %v783
    %v785 = vand.u32 %v97, 4294901760
    %786 = vmatprep.subr.mxu0 %v785
    %v787 = vand.u32 %v96, 4294901760
    %788 = vmatpush1.msra.mxu0 %v787
    %v789 = vand.u32 %v88, 4294901760
    %790 = vmatprep.subr.mxu0 %v789
    %v791 = vand.u32 %v87, 4294901760
    %792 = vmatpush1.msra.mxu0 %v791
    %v793 = vand.u32 %v79, 4294901760
    %794 = vmatprep.subr.mxu0 %v793
    %v795 = vand.u32 %v78, 4294901760
    %796 = vmatpush1.msra.mxu0 %v795
    %v797 = vand.u32 %v70, 4294901760
    %798 = vmatprep.subr.mxu0 %v797
    %v799 = vand.u32 %v69, 4294901760
    %800 = vmatpush1.msra.mxu0 %v799
    %801 = vmatprep.subr.mxu0 0.0
    %802 = vmatpush2.msra.mxu0 0.0
    %803 = vmatprep.subr.mxu0 0.0
    %804 = vmatpush2.msra.mxu0 0.0
    %805 = vmatprep.subr.mxu0 0.0
    %806 = vmatpush2.msra.mxu0 0.0
    %807 = vmatprep.subr.mxu0 0.0
    %808 = vmatpush2.msra.mxu0 0.0
    %809 = vmatprep.subr.mxu0 0.0
    %810 = vmatpush2.msra.mxu0 0.0
    %811 = vmatprep.subr.mxu0 0.0
    %812 = vmatpush2.msra.mxu0 0.0
    %813 = vmatprep.subr.mxu0 0.0
    %814 = vmatpush2.msra.mxu0 0.0
    %815 = vmatprep.subr.mxu0 0.0
    %816 = vmatpush2.msra.mxu0 0.0
    %817 = vmatprep.subr.mxu0 0.0
    %818 = vmatpush2.msra.mxu0 0.0
    %819 = vmatprep.subr.mxu0 0.0
    %820 = vmatpush2.msra.mxu0 0.0
    %821 = vmatprep.subr.mxu0 0.0
    %822 = vmatpush2.msra.mxu0 0.0
    %823 = vmatprep.subr.mxu0 0.0
    %824 = vmatpush2.msra.mxu0 0.0
    %825 = vmatprep.subr.mxu0 0.0
    %826 = vmatpush2.msra.mxu0 0.0
    %827 = vmatprep.subr.mxu0 0.0
    %828 = vmatpush2.msra.mxu0 0.0
    %829 = vmatprep.subr.mxu0 0.0
    %830 = vmatpush2.msra.mxu0 0.0
    %831 = vmatprep.subr.mxu0 0.0
    %832 = vmatpush2.msra.mxu0 0.0
    %833 = vmatprep.mubr.f32.mxu0 0.0
    %v834 = vand.u32 %v136, 4294901760
    %835 = vmatmul.mubr.f32.gmra.mxu0 %v834
    %v836 = vpop.f32.mrf.mxu0
    %v837 = vadd.f32 %v745, %v836
    %v838 = vpop.f32.mrf.mxu0
    %v839 = vadd.f32 %v747, %v838
    %840 = vdwg.mxu0
    %vm841 = vcmp.gt.f32.partialorder %v837, 20.0
    %vm842 = vcmp.gt.f32.partialorder %v839, 20.0
    %v843 = vmin.f32 %v837, 20.0
    %v844 = vmin.f32 %v839, 20.0
    %v845 = vmul.f32 %v843, 1.442695
    %v846 = vpow.pop %v845
    %v847 = vmul.f32 %v844, 1.442695
    %v848 = vpow.pop %v847
    %v849 = vadd.f32 %v846, 1.0
    %v850 = vadd.f32 %v848, 1.0
    %v851 = vlog2.pop %v849
    %v852 = vmul.f32 %v851, 0.6931472
    %v853 = vlog2.pop %v850
    %v854 = vmul.f32 %v853, 0.6931472
    %v855 = vsel %vm841, %v837, %v852
    %v856 = vsel %vm842, %v839, %v854
    %s857 = scalar_lea.vmem [#allocation5], 8
    %v858 = vld [vmem:[%s857] sm:$0xff]
    %859 = vrot.lane.b32.xlu0 %v855, 17
    %v860 = vpop.permute.xlu0 %859
    %861 = vrot.lane.b32.xlu0 %v856, 17
    %v862 = vpop.permute.xlu0 %861
    %v863 = vsel %vm66, %v860, %v862
    %v864 = vsel %vm66, %v862, %v860
    %v865 = vsel %vm53, %v864, 0.0
    %v866 = vsel %vm54, %v863, 0.0
    %867 = vrot.lane.b32.xlu0 %v855, 16
    %v868 = vpop.permute.xlu0 %867
    %869 = vrot.lane.b32.xlu0 %v856, 16
    %v870 = vpop.permute.xlu0 %869
    %v871 = vsel %vm75, %v868, %v870
    %v872 = vsel %vm75, %v870, %v868
    %v873 = vsel %vm45, %v872, 0.0
    %v874 = vsel %vm46, %v871, 0.0
    %875 = vrot.lane.b32.xlu0 %v855, 15
    %v876 = vpop.permute.xlu0 %875
    %877 = vrot.lane.b32.xlu0 %v856, 15
    %v878 = vpop.permute.xlu0 %877
    %v879 = vsel %vm84, %v876, %v878
    %v880 = vsel %vm84, %v878, %v876
    %v881 = vsel %vm55, %v880, 0.0
    %v882 = vsel %vm56, %v879, 0.0
    %883 = vrot.lane.b32.xlu0 %v855, 1
    %v884 = vpop.permute.xlu0 %883
    %885 = vrot.lane.b32.xlu0 %v856, 1
    %v886 = vpop.permute.xlu0 %885
    %v887 = vsel %vm93, %v884, %v886
    %v888 = vsel %vm93, %v886, %v884
    %v889 = vsel %vm49, %v888, 0.0
    %v890 = vsel %vm50, %v887, 0.0
    %891 = vrot.lane.b32.xlu0 %v855, 127
    %v892 = vpop.permute.xlu0 %891
    %893 = vrot.lane.b32.xlu0 %v856, 127
    %v894 = vpop.permute.xlu0 %893
    %v895 = vsel %vm102, %v892, %v894
    %v896 = vsel %vm102, %v894, %v892
    %v897 = vsel %vm51, %v895, 0.0
    %v898 = vsel %vm52, %v896, 0.0
    %899 = vrot.lane.b32.xlu0 %v855, 113
    %v900 = vpop.permute.xlu0 %899
    %901 = vrot.lane.b32.xlu0 %v856, 113
    %v902 = vpop.permute.xlu0 %901
    %v903 = vsel %vm111, %v900, %v902
    %v904 = vsel %vm111, %v902, %v900
    %v905 = vsel %vm57, %v903, 0.0
    %v906 = vsel %vm58, %v904, 0.0
    %907 = vrot.lane.b32.xlu0 %v855, 112
    %v908 = vpop.permute.xlu0 %907
    %909 = vrot.lane.b32.xlu0 %v856, 112
    %v910 = vpop.permute.xlu0 %909
    %v911 = vsel %vm120, %v908, %v910
    %v912 = vsel %vm120, %v910, %v908
    %v913 = vsel %vm47, %v911, 0.0
    %v914 = vsel %vm48, %v912, 0.0
    %915 = vrot.lane.b32.xlu0 %v855, 111
    %v916 = vpop.permute.xlu0 %915
    %917 = vrot.lane.b32.xlu0 %v856, 111
    %v918 = vpop.permute.xlu0 %917
    %v919 = vsel %vm129, %v916, %v918
    %v920 = vsel %vm129, %v918, %v916
    %v921 = vsel %vm59, %v919, 0.0
    %v922 = vsel %vm60, %v920, 0.0
    %v924 = vsel %vm134, %v858, 0
    %926 = vmatprep.subr.mxu0 0.0
    %927 = vmatpush1.msra.mxu0 0.0
    %928 = vmatprep.subr.mxu0 0.0
    %929 = vmatpush1.msra.mxu0 0.0
    %930 = vmatprep.subr.mxu0 0.0
    %931 = vmatpush1.msra.mxu0 0.0
    %932 = vmatprep.subr.mxu0 0.0
    %933 = vmatpush1.msra.mxu0 0.0
    %934 = vmatprep.subr.mxu0 0.0
    %935 = vmatpush1.msra.mxu0 0.0
    %936 = vmatprep.subr.mxu0 0.0
    %937 = vmatpush1.msra.mxu0 0.0
    %v938 = vand.u32 %v140, 4294901760
    %939 = vmatprep.subr.mxu0 %v938
    %v940 = vand.u32 %v140, 4294901760
    %941 = vmatpush1.msra.mxu0 %v940
    %v942 = vand.u32 %v922, 4294901760
    %943 = vmatprep.subr.mxu0 %v942
    %v944 = vand.u32 %v921, 4294901760
    %945 = vmatpush1.msra.mxu0 %v944
    %v946 = vand.u32 %v914, 4294901760
    %947 = vmatprep.subr.mxu0 %v946
    %v948 = vand.u32 %v913, 4294901760
    %949 = vmatpush1.msra.mxu0 %v948
    %v950 = vand.u32 %v906, 4294901760
    %951 = vmatprep.subr.mxu0 %v950
    %v952 = vand.u32 %v905, 4294901760
    %953 = vmatpush1.msra.mxu0 %v952
    %v954 = vand.u32 %v898, 4294901760
    %955 = vmatprep.subr.mxu0 %v954
    %v956 = vand.u32 %v897, 4294901760
    %957 = vmatpush1.msra.mxu0 %v956
    %v958 = vand.u32 %v856, 4294901760
    %959 = vmatprep.subr.mxu0 %v958
    %v960 = vand.u32 %v855, 4294901760
    %961 = vmatpush1.msra.mxu0 %v960
    %v962 = vand.u32 %v890, 4294901760
    %963 = vmatprep.subr.mxu0 %v962
    %v964 = vand.u32 %v889, 4294901760
    %965 = vmatpush1.msra.mxu0 %v964
    %v966 = vand.u32 %v882, 4294901760
    %967 = vmatprep.subr.mxu0 %v966
    %v968 = vand.u32 %v881, 4294901760
    %969 = vmatpush1.msra.mxu0 %v968
    %v970 = vand.u32 %v874, 4294901760
    %971 = vmatprep.subr.mxu0 %v970
    %v972 = vand.u32 %v873, 4294901760
    %973 = vmatpush1.msra.mxu0 %v972
    %v974 = vand.u32 %v866, 4294901760
    %975 = vmatprep.subr.mxu0 %v974
    %v976 = vand.u32 %v865, 4294901760
    %977 = vmatpush1.msra.mxu0 %v976
    %978 = vmatprep.subr.mxu0 0.0
    %979 = vmatpush2.msra.mxu0 0.0
    %980 = vmatprep.subr.mxu0 0.0
    %981 = vmatpush2.msra.mxu0 0.0
    %982 = vmatprep.subr.mxu0 0.0
    %983 = vmatpush2.msra.mxu0 0.0
    %984 = vmatprep.subr.mxu0 0.0
    %985 = vmatpush2.msra.mxu0 0.0
    %986 = vmatprep.subr.mxu0 0.0
    %987 = vmatpush2.msra.mxu0 0.0
    %988 = vmatprep.subr.mxu0 0.0
    %989 = vmatpush2.msra.mxu0 0.0
    %990 = vmatprep.subr.mxu0 0.0
    %991 = vmatpush2.msra.mxu0 0.0
    %992 = vmatprep.subr.mxu0 0.0
    %993 = vmatpush2.msra.mxu0 0.0
    %994 = vmatprep.subr.mxu0 0.0
    %995 = vmatpush2.msra.mxu0 0.0
    %996 = vmatprep.subr.mxu0 0.0
    %997 = vmatpush2.msra.mxu0 0.0
    %998 = vmatprep.subr.mxu0 0.0
    %999 = vmatpush2.msra.mxu0 0.0
    %1000 = vmatprep.subr.mxu0 0.0
    %1001 = vmatpush2.msra.mxu0 0.0
    %1002 = vmatprep.subr.mxu0 0.0
    %1003 = vmatpush2.msra.mxu0 0.0
    %1004 = vmatprep.subr.mxu0 0.0
    %1005 = vmatpush2.msra.mxu0 0.0
    %1006 = vmatprep.subr.mxu0 0.0
    %1007 = vmatpush2.msra.mxu0 0.0
    %1008 = vmatprep.subr.mxu0 0.0
    %1009 = vmatpush2.msra.mxu0 0.0
    %1010 = vmatprep.mubr.f32.mxu0 0.0
    %v1011 = vand.u32 %v924, 4294901760
    %v1012 = vsub.f32 %v924, %v1011
    %v1013 = vand.u32 %v1012, 4294901760
    %v1014 = vsub.f32 %v1012, %v1013
    %v1015 = vand.u32 %v1014, 4294901760
    %1016 = vmatmul.mubr.f32.gmra.mxu0 %v1015
    %v1017 = vpop.f32.mrf.mxu0
    %v1018 = vadd.f32 %v38, %v1017
    %v1019 = vpop.f32.mrf.mxu0
    %v1020 = vadd.f32 %v39, %v1019
    %1021 = vdwg.mxu0
    %1022 = vmatprep.subr.mxu0 0.0
    %1023 = vmatpush1.msra.mxu0 0.0
    %1024 = vmatprep.subr.mxu0 0.0
    %1025 = vmatpush1.msra.mxu0 0.0
    %1026 = vmatprep.subr.mxu0 0.0
    %1027 = vmatpush1.msra.mxu0 0.0
    %1028 = vmatprep.subr.mxu0 0.0
    %1029 = vmatpush1.msra.mxu0 0.0
    %1030 = vmatprep.subr.mxu0 0.0
    %1031 = vmatpush1.msra.mxu0 0.0
    %1032 = vmatprep.subr.mxu0 0.0
    %1033 = vmatpush1.msra.mxu0 0.0
    %v1034 = vand.u32 %v140, 4294901760
    %v1035 = vsub.f32 %v140, %v1034
    %v1036 = vand.u32 %v1035, 4294901760
    %v1037 = vsub.f32 %v1035, %v1036
    %v1038 = vand.u32 %v1037, 4294901760
    %1039 = vmatprep.subr.mxu0 %v1038
    %v1040 = vand.u32 %v140, 4294901760
    %v1041 = vsub.f32 %v140, %v1040
    %v1042 = vand.u32 %v1041, 4294901760
    %v1043 = vsub.f32 %v1041, %v1042
    %v1044 = vand.u32 %v1043, 4294901760
    %1045 = vmatpush1.msra.mxu0 %v1044
    %v1046 = vand.u32 %v922, 4294901760
    %v1047 = vsub.f32 %v922, %v1046
    %v1048 = vand.u32 %v1047, 4294901760
    %v1049 = vsub.f32 %v1047, %v1048
    %v1050 = vand.u32 %v1049, 4294901760
    %1051 = vmatprep.subr.mxu0 %v1050
    %v1052 = vand.u32 %v921, 4294901760
    %v1053 = vsub.f32 %v921, %v1052
    %v1054 = vand.u32 %v1053, 4294901760
    %v1055 = vsub.f32 %v1053, %v1054
    %v1056 = vand.u32 %v1055, 4294901760
    %1057 = vmatpush1.msra.mxu0 %v1056
    %v1058 = vand.u32 %v914, 4294901760
    %v1059 = vsub.f32 %v914, %v1058
    %v1060 = vand.u32 %v1059, 4294901760
    %v1061 = vsub.f32 %v1059, %v1060
    %v1062 = vand.u32 %v1061, 4294901760
    %1063 = vmatprep.subr.mxu0 %v1062
    %v1064 = vand.u32 %v913, 4294901760
    %v1065 = vsub.f32 %v913, %v1064
    %v1066 = vand.u32 %v1065, 4294901760
    %v1067 = vsub.f32 %v1065, %v1066
    %v1068 = vand.u32 %v1067, 4294901760
    %1069 = vmatpush1.msra.mxu0 %v1068
    %v1070 = vand.u32 %v906, 4294901760
    %v1071 = vsub.f32 %v906, %v1070
    %v1072 = vand.u32 %v1071, 4294901760
    %v1073 = vsub.f32 %v1071, %v1072
    %v1074 = vand.u32 %v1073, 4294901760
    %1075 = vmatprep.subr.mxu0 %v1074
    %v1076 = vand.u32 %v905, 4294901760
    %v1077 = vsub.f32 %v905, %v1076
    %v1078 = vand.u32 %v1077, 4294901760
    %v1079 = vsub.f32 %v1077, %v1078
    %v1080 = vand.u32 %v1079, 4294901760
    %1081 = vmatpush1.msra.mxu0 %v1080
    %v1082 = vand.u32 %v898, 4294901760
    %v1083 = vsub.f32 %v898, %v1082
    %v1084 = vand.u32 %v1083, 4294901760
    %v1085 = vsub.f32 %v1083, %v1084
    %v1086 = vand.u32 %v1085, 4294901760
    %1087 = vmatprep.subr.mxu0 %v1086
    %v1088 = vand.u32 %v897, 4294901760
    %v1089 = vsub.f32 %v897, %v1088
    %v1090 = vand.u32 %v1089, 4294901760
    %v1091 = vsub.f32 %v1089, %v1090
    %v1092 = vand.u32 %v1091, 4294901760
    %1093 = vmatpush1.msra.mxu0 %v1092
    %v1094 = vand.u32 %v856, 4294901760
    %v1095 = vsub.f32 %v856, %v1094
    %v1096 = vand.u32 %v1095, 4294901760
    %v1097 = vsub.f32 %v1095, %v1096
    %v1098 = vand.u32 %v1097, 4294901760
    %1099 = vmatprep.subr.mxu0 %v1098
    %v1100 = vand.u32 %v855, 4294901760
    %v1101 = vsub.f32 %v855, %v1100
    %v1102 = vand.u32 %v1101, 4294901760
    %v1103 = vsub.f32 %v1101, %v1102
    %v1104 = vand.u32 %v1103, 4294901760
    %1105 = vmatpush1.msra.mxu0 %v1104
    %v1106 = vand.u32 %v890, 4294901760
    %v1107 = vsub.f32 %v890, %v1106
    %v1108 = vand.u32 %v1107, 4294901760
    %v1109 = vsub.f32 %v1107, %v1108
    %v1110 = vand.u32 %v1109, 4294901760
    %1111 = vmatprep.subr.mxu0 %v1110
    %v1112 = vand.u32 %v889, 4294901760
    %v1113 = vsub.f32 %v889, %v1112
    %v1114 = vand.u32 %v1113, 4294901760
    %v1115 = vsub.f32 %v1113, %v1114
    %v1116 = vand.u32 %v1115, 4294901760
    %1117 = vmatpush1.msra.mxu0 %v1116
    %v1118 = vand.u32 %v882, 4294901760
    %v1119 = vsub.f32 %v882, %v1118
    %v1120 = vand.u32 %v1119, 4294901760
    %v1121 = vsub.f32 %v1119, %v1120
    %v1122 = vand.u32 %v1121, 4294901760
    %1123 = vmatprep.subr.mxu0 %v1122
    %v1124 = vand.u32 %v881, 4294901760
    %v1125 = vsub.f32 %v881, %v1124
    %v1126 = vand.u32 %v1125, 4294901760
    %v1127 = vsub.f32 %v1125, %v1126
    %v1128 = vand.u32 %v1127, 4294901760
    %1129 = vmatpush1.msra.mxu0 %v1128
    %v1130 = vand.u32 %v874, 4294901760
    %v1131 = vsub.f32 %v874, %v1130
    %v1132 = vand.u32 %v1131, 4294901760
    %v1133 = vsub.f32 %v1131, %v1132
    %v1134 = vand.u32 %v1133, 4294901760
    %1135 = vmatprep.subr.mxu0 %v1134
    %v1136 = vand.u32 %v873, 4294901760
    %v1137 = vsub.f32 %v873, %v1136
    %v1138 = vand.u32 %v1137, 4294901760
    %v1139 = vsub.f32 %v1137, %v1138
    %v1140 = vand.u32 %v1139, 4294901760
    %1141 = vmatpush1.msra.mxu0 %v1140
    %v1142 = vand.u32 %v866, 4294901760
    %v1143 = vsub.f32 %v866, %v1142
    %v1144 = vand.u32 %v1143, 4294901760
    %v1145 = vsub.f32 %v1143, %v1144
    %v1146 = vand.u32 %v1145, 4294901760
    %1147 = vmatprep.subr.mxu0 %v1146
    %v1148 = vand.u32 %v865, 4294901760
    %v1149 = vsub.f32 %v865, %v1148
    %v1150 = vand.u32 %v1149, 4294901760
    %v1151 = vsub.f32 %v1149, %v1150
    %v1152 = vand.u32 %v1151, 4294901760
    %1153 = vmatpush1.msra.mxu0 %v1152
    %1154 = vmatprep.subr.mxu0 0.0
    %1155 = vmatpush2.msra.mxu0 0.0
    %1156 = vmatprep.subr.mxu0 0.0
    %1157 = vmatpush2.msra.mxu0 0.0
    %1158 = vmatprep.subr.mxu0 0.0
    %1159 = vmatpush2.msra.mxu0 0.0
    %1160 = vmatprep.subr.mxu0 0.0
    %1161 = vmatpush2.msra.mxu0 0.0
    %1162 = vmatprep.subr.mxu0 0.0
    %1163 = vmatpush2.msra.mxu0 0.0
    %1164 = vmatprep.subr.mxu0 0.0
    %1165 = vmatpush2.msra.mxu0 0.0
    %1166 = vmatprep.subr.mxu0 0.0
    %1167 = vmatpush2.msra.mxu0 0.0
    %1168 = vmatprep.subr.mxu0 0.0
    %1169 = vmatpush2.msra.mxu0 0.0
    %1170 = vmatprep.subr.mxu0 0.0
    %1171 = vmatpush2.msra.mxu0 0.0
    %1172 = vmatprep.subr.mxu0 0.0
    %1173 = vmatpush2.msra.mxu0 0.0
    %1174 = vmatprep.subr.mxu0 0.0
    %1175 = vmatpush2.msra.mxu0 0.0
    %1176 = vmatprep.subr.mxu0 0.0
    %1177 = vmatpush2.msra.mxu0 0.0
    %1178 = vmatprep.subr.mxu0 0.0
    %1179 = vmatpush2.msra.mxu0 0.0
    %1180 = vmatprep.subr.mxu0 0.0
    %1181 = vmatpush2.msra.mxu0 0.0
    %1182 = vmatprep.subr.mxu0 0.0
    %1183 = vmatpush2.msra.mxu0 0.0
    %1184 = vmatprep.subr.mxu0 0.0
    %1185 = vmatpush2.msra.mxu0 0.0
    %1186 = vmatprep.mubr.f32.mxu0 0.0
    %v1187 = vand.u32 %v924, 4294901760
    %1188 = vmatmul.mubr.f32.gmra.mxu0 %v1187
    %v1189 = vpop.f32.mrf.mxu0
    %v1190 = vadd.f32 %v1018, %v1189
    %v1191 = vpop.f32.mrf.mxu0
    %v1192 = vadd.f32 %v1020, %v1191
    %1193 = vdwg.mxu0
    %1194 = vmatprep.subr.mxu0 0.0
    %1195 = vmatpush1.msra.mxu0 0.0
    %1196 = vmatprep.subr.mxu0 0.0
    %1197 = vmatpush1.msra.mxu0 0.0
    %1198 = vmatprep.subr.mxu0 0.0
    %1199 = vmatpush1.msra.mxu0 0.0
    %1200 = vmatprep.subr.mxu0 0.0
    %1201 = vmatpush1.msra.mxu0 0.0
    %1202 = vmatprep.subr.mxu0 0.0
    %1203 = vmatpush1.msra.mxu0 0.0
    %1204 = vmatprep.subr.mxu0 0.0
    %1205 = vmatpush1.msra.mxu0 0.0
    %v1206 = vand.u32 %v140, 4294901760
    %v1207 = vsub.f32 %v140, %v1206
    %1208 = vmatprep.subr.mxu0 %v1207
    %v1209 = vand.u32 %v140, 4294901760
    %v1210 = vsub.f32 %v140, %v1209
    %1211 = vmatpush1.msra.mxu0 %v1210
    %v1212 = vand.u32 %v922, 4294901760
    %v1213 = vsub.f32 %v922, %v1212
    %1214 = vmatprep.subr.mxu0 %v1213
    %v1215 = vand.u32 %v921, 4294901760
    %v1216 = vsub.f32 %v921, %v1215
    %1217 = vmatpush1.msra.mxu0 %v1216
    %v1218 = vand.u32 %v914, 4294901760
    %v1219 = vsub.f32 %v914, %v1218
    %1220 = vmatprep.subr.mxu0 %v1219
    %v1221 = vand.u32 %v913, 4294901760
    %v1222 = vsub.f32 %v913, %v1221
    %1223 = vmatpush1.msra.mxu0 %v1222
    %v1224 = vand.u32 %v906, 4294901760
    %v1225 = vsub.f32 %v906, %v1224
    %1226 = vmatprep.subr.mxu0 %v1225
    %v1227 = vand.u32 %v905, 4294901760
    %v1228 = vsub.f32 %v905, %v1227
    %1229 = vmatpush1.msra.mxu0 %v1228
    %v1230 = vand.u32 %v898, 4294901760
    %v1231 = vsub.f32 %v898, %v1230
    %1232 = vmatprep.subr.mxu0 %v1231
    %v1233 = vand.u32 %v897, 4294901760
    %v1234 = vsub.f32 %v897, %v1233
    %1235 = vmatpush1.msra.mxu0 %v1234
    %v1236 = vand.u32 %v856, 4294901760
    %v1237 = vsub.f32 %v856, %v1236
    %1238 = vmatprep.subr.mxu0 %v1237
    %v1239 = vand.u32 %v855, 4294901760
    %v1240 = vsub.f32 %v855, %v1239
    %1241 = vmatpush1.msra.mxu0 %v1240
    %v1242 = vand.u32 %v890, 4294901760
    %v1243 = vsub.f32 %v890, %v1242
    %1244 = vmatprep.subr.mxu0 %v1243
    %v1245 = vand.u32 %v889, 4294901760
    %v1246 = vsub.f32 %v889, %v1245
    %1247 = vmatpush1.msra.mxu0 %v1246
    %v1248 = vand.u32 %v882, 4294901760
    %v1249 = vsub.f32 %v882, %v1248
    %1250 = vmatprep.subr.mxu0 %v1249
    %v1251 = vand.u32 %v881, 4294901760
    %v1252 = vsub.f32 %v881, %v1251
    %1253 = vmatpush1.msra.mxu0 %v1252
    %v1254 = vand.u32 %v874, 4294901760
    %v1255 = vsub.f32 %v874, %v1254
    %1256 = vmatprep.subr.mxu0 %v1255
    %v1257 = vand.u32 %v873, 4294901760
    %v1258 = vsub.f32 %v873, %v1257
    %1259 = vmatpush1.msra.mxu0 %v1258
    %v1260 = vand.u32 %v866, 4294901760
    %v1261 = vsub.f32 %v866, %v1260
    %1262 = vmatprep.subr.mxu0 %v1261
    %v1263 = vand.u32 %v865, 4294901760
    %v1264 = vsub.f32 %v865, %v1263
    %1265 = vmatpush1.msra.mxu0 %v1264
    %1266 = vmatprep.subr.mxu0 0.0
    %1267 = vmatpush2.msra.mxu0 0.0
    %1268 = vmatprep.subr.mxu0 0.0
    %1269 = vmatpush2.msra.mxu0 0.0
    %1270 = vmatprep.subr.mxu0 0.0
    %1271 = vmatpush2.msra.mxu0 0.0
    %1272 = vmatprep.subr.mxu0 0.0
    %1273 = vmatpush2.msra.mxu0 0.0
    %1274 = vmatprep.subr.mxu0 0.0
    %1275 = vmatpush2.msra.mxu0 0.0
    %1276 = vmatprep.subr.mxu0 0.0
    %1277 = vmatpush2.msra.mxu0 0.0
    %1278 = vmatprep.subr.mxu0 0.0
    %1279 = vmatpush2.msra.mxu0 0.0
    %1280 = vmatprep.subr.mxu0 0.0
    %1281 = vmatpush2.msra.mxu0 0.0
    %1282 = vmatprep.subr.mxu0 0.0
    %1283 = vmatpush2.msra.mxu0 0.0
    %1284 = vmatprep.subr.mxu0 0.0
    %1285 = vmatpush2.msra.mxu0 0.0
    %1286 = vmatprep.subr.mxu0 0.0
    %1287 = vmatpush2.msra.mxu0 0.0
    %1288 = vmatprep.subr.mxu0 0.0
    %1289 = vmatpush2.msra.mxu0 0.0
    %1290 = vmatprep.subr.mxu0 0.0
    %1291 = vmatpush2.msra.mxu0 0.0
    %1292 = vmatprep.subr.mxu0 0.0
    %1293 = vmatpush2.msra.mxu0 0.0
    %1294 = vmatprep.subr.mxu0 0.0
    %1295 = vmatpush2.msra.mxu0 0.0
    %1296 = vmatprep.subr.mxu0 0.0
    %1297 = vmatpush2.msra.mxu0 0.0
    %1298 = vmatprep.mubr.f32.mxu0 0.0
    %v1299 = vand.u32 %v924, 4294901760
    %v1300 = vsub.f32 %v924, %v1299
    %1301 = vmatmul.mubr.f32.gmra.mxu0 %v1300
    %v1302 = vpop.f32.mrf.mxu0
    %v1303 = vadd.f32 %v1190, %v1302
    %v1304 = vpop.f32.mrf.mxu0
    %v1305 = vadd.f32 %v1192, %v1304
    %1306 = vdwg.mxu0
    %1307 = vmatprep.subr.mxu0 0.0
    %1308 = vmatpush1.msra.mxu0 0.0
    %1309 = vmatprep.subr.mxu0 0.0
    %1310 = vmatpush1.msra.mxu0 0.0
    %1311 = vmatprep.subr.mxu0 0.0
    %1312 = vmatpush1.msra.mxu0 0.0
    %1313 = vmatprep.subr.mxu0 0.0
    %1314 = vmatpush1.msra.mxu0 0.0
    %1315 = vmatprep.subr.mxu0 0.0
    %1316 = vmatpush1.msra.mxu0 0.0
    %1317 = vmatprep.subr.mxu0 0.0
    %1318 = vmatpush1.msra.mxu0 0.0
    %v1319 = vand.u32 %v140, 4294901760
    %1320 = vmatprep.subr.mxu0 %v1319
    %v1321 = vand.u32 %v140, 4294901760
    %1322 = vmatpush1.msra.mxu0 %v1321
    %v1323 = vand.u32 %v922, 4294901760
    %1324 = vmatprep.subr.mxu0 %v1323
    %v1325 = vand.u32 %v921, 4294901760
    %1326 = vmatpush1.msra.mxu0 %v1325
    %v1327 = vand.u32 %v914, 4294901760
    %1328 = vmatprep.subr.mxu0 %v1327
    %v1329 = vand.u32 %v913, 4294901760
    %1330 = vmatpush1.msra.mxu0 %v1329
    %v1331 = vand.u32 %v906, 4294901760
    %1332 = vmatprep.subr.mxu0 %v1331
    %v1333 = vand.u32 %v905, 4294901760
    %1334 = vmatpush1.msra.mxu0 %v1333
    %v1335 = vand.u32 %v898, 4294901760
    %1336 = vmatprep.subr.mxu0 %v1335
    %v1337 = vand.u32 %v897, 4294901760
    %1338 = vmatpush1.msra.mxu0 %v1337
    %v1339 = vand.u32 %v856, 4294901760
    %1340 = vmatprep.subr.mxu0 %v1339
    %v1341 = vand.u32 %v855, 4294901760
    %1342 = vmatpush1.msra.mxu0 %v1341
    %v1343 = vand.u32 %v890, 4294901760
    %1344 = vmatprep.subr.mxu0 %v1343
    %v1345 = vand.u32 %v889, 4294901760
    %1346 = vmatpush1.msra.mxu0 %v1345
    %v1347 = vand.u32 %v882, 4294901760
    %1348 = vmatprep.subr.mxu0 %v1347
    %v1349 = vand.u32 %v881, 4294901760
    %1350 = vmatpush1.msra.mxu0 %v1349
    %v1351 = vand.u32 %v874, 4294901760
    %1352 = vmatprep.subr.mxu0 %v1351
    %v1353 = vand.u32 %v873, 4294901760
    %1354 = vmatpush1.msra.mxu0 %v1353
    %v1355 = vand.u32 %v866, 4294901760
    %1356 = vmatprep.subr.mxu0 %v1355
    %v1357 = vand.u32 %v865, 4294901760
    %1358 = vmatpush1.msra.mxu0 %v1357
    %1359 = vmatprep.subr.mxu0 0.0
    %1360 = vmatpush2.msra.mxu0 0.0
    %1361 = vmatprep.subr.mxu0 0.0
    %1362 = vmatpush2.msra.mxu0 0.0
    %1363 = vmatprep.subr.mxu0 0.0
    %1364 = vmatpush2.msra.mxu0 0.0
    %1365 = vmatprep.subr.mxu0 0.0
    %1366 = vmatpush2.msra.mxu0 0.0
    %1367 = vmatprep.subr.mxu0 0.0
    %1368 = vmatpush2.msra.mxu0 0.0
    %1369 = vmatprep.subr.mxu0 0.0
    %1370 = vmatpush2.msra.mxu0 0.0
    %1371 = vmatprep.subr.mxu0 0.0
    %1372 = vmatpush2.msra.mxu0 0.0
    %1373 = vmatprep.subr.mxu0 0.0
    %1374 = vmatpush2.msra.mxu0 0.0
    %1375 = vmatprep.subr.mxu0 0.0
    %1376 = vmatpush2.msra.mxu0 0.0
    %1377 = vmatprep.subr.mxu0 0.0
    %1378 = vmatpush2.msra.mxu0 0.0
    %1379 = vmatprep.subr.mxu0 0.0
    %1380 = vmatpush2.msra.mxu0 0.0
    %1381 = vmatprep.subr.mxu0 0.0
    %1382 = vmatpush2.msra.mxu0 0.0
    %1383 = vmatprep.subr.mxu0 0.0
    %1384 = vmatpush2.msra.mxu0 0.0
    %1385 = vmatprep.subr.mxu0 0.0
    %1386 = vmatpush2.msra.mxu0 0.0
    %1387 = vmatprep.subr.mxu0 0.0
    %1388 = vmatpush2.msra.mxu0 0.0
    %1389 = vmatprep.subr.mxu0 0.0
    %1390 = vmatpush2.msra.mxu0 0.0
    %1391 = vmatprep.mubr.f32.mxu0 0.0
    %v1392 = vand.u32 %v924, 4294901760
    %v1393 = vsub.f32 %v924, %v1392
    %v1394 = vand.u32 %v1393, 4294901760
    %1395 = vmatmul.mubr.f32.gmra.mxu0 %v1394
    %v1396 = vpop.f32.mrf.mxu0
    %v1397 = vadd.f32 %v1303, %v1396
    %v1398 = vpop.f32.mrf.mxu0
    %v1399 = vadd.f32 %v1305, %v1398
    %1400 = vdwg.mxu0
    %1401 = vmatprep.subr.mxu0 0.0
    %1402 = vmatpush1.msra.mxu0 0.0
    %1403 = vmatprep.subr.mxu0 0.0
    %1404 = vmatpush1.msra.mxu0 0.0
    %1405 = vmatprep.subr.mxu0 0.0
    %1406 = vmatpush1.msra.mxu0 0.0
    %1407 = vmatprep.subr.mxu0 0.0
    %1408 = vmatpush1.msra.mxu0 0.0
    %1409 = vmatprep.subr.mxu0 0.0
    %1410 = vmatpush1.msra.mxu0 0.0
    %1411 = vmatprep.subr.mxu0 0.0
    %1412 = vmatpush1.msra.mxu0 0.0
    %v1413 = vand.u32 %v140, 4294901760
    %v1414 = vsub.f32 %v140, %v1413
    %v1415 = vand.u32 %v1414, 4294901760
    %1416 = vmatprep.subr.mxu0 %v1415
    %v1417 = vand.u32 %v140, 4294901760
    %v1418 = vsub.f32 %v140, %v1417
    %v1419 = vand.u32 %v1418, 4294901760
    %1420 = vmatpush1.msra.mxu0 %v1419
    %v1421 = vand.u32 %v922, 4294901760
    %v1422 = vsub.f32 %v922, %v1421
    %v1423 = vand.u32 %v1422, 4294901760
    %1424 = vmatprep.subr.mxu0 %v1423
    %v1425 = vand.u32 %v921, 4294901760
    %v1426 = vsub.f32 %v921, %v1425
    %v1427 = vand.u32 %v1426, 4294901760
    %1428 = vmatpush1.msra.mxu0 %v1427
    %v1429 = vand.u32 %v914, 4294901760
    %v1430 = vsub.f32 %v914, %v1429
    %v1431 = vand.u32 %v1430, 4294901760
    %1432 = vmatprep.subr.mxu0 %v1431
    %v1433 = vand.u32 %v913, 4294901760
    %v1434 = vsub.f32 %v913, %v1433
    %v1435 = vand.u32 %v1434, 4294901760
    %1436 = vmatpush1.msra.mxu0 %v1435
    %v1437 = vand.u32 %v906, 4294901760
    %v1438 = vsub.f32 %v906, %v1437
    %v1439 = vand.u32 %v1438, 4294901760
    %1440 = vmatprep.subr.mxu0 %v1439
    %v1441 = vand.u32 %v905, 4294901760
    %v1442 = vsub.f32 %v905, %v1441
    %v1443 = vand.u32 %v1442, 4294901760
    %1444 = vmatpush1.msra.mxu0 %v1443
    %v1445 = vand.u32 %v898, 4294901760
    %v1446 = vsub.f32 %v898, %v1445
    %v1447 = vand.u32 %v1446, 4294901760
    %1448 = vmatprep.subr.mxu0 %v1447
    %v1449 = vand.u32 %v897, 4294901760
    %v1450 = vsub.f32 %v897, %v1449
    %v1451 = vand.u32 %v1450, 4294901760
    %1452 = vmatpush1.msra.mxu0 %v1451
    %v1453 = vand.u32 %v856, 4294901760
    %v1454 = vsub.f32 %v856, %v1453
    %v1455 = vand.u32 %v1454, 4294901760
    %1456 = vmatprep.subr.mxu0 %v1455
    %v1457 = vand.u32 %v855, 4294901760
    %v1458 = vsub.f32 %v855, %v1457
    %v1459 = vand.u32 %v1458, 4294901760
    %1460 = vmatpush1.msra.mxu0 %v1459
    %v1461 = vand.u32 %v890, 4294901760
    %v1462 = vsub.f32 %v890, %v1461
    %v1463 = vand.u32 %v1462, 4294901760
    %1464 = vmatprep.subr.mxu0 %v1463
    %v1465 = vand.u32 %v889, 4294901760
    %v1466 = vsub.f32 %v889, %v1465
    %v1467 = vand.u32 %v1466, 4294901760
    %1468 = vmatpush1.msra.mxu0 %v1467
    %v1469 = vand.u32 %v882, 4294901760
    %v1470 = vsub.f32 %v882, %v1469
    %v1471 = vand.u32 %v1470, 4294901760
    %1472 = vmatprep.subr.mxu0 %v1471
    %v1473 = vand.u32 %v881, 4294901760
    %v1474 = vsub.f32 %v881, %v1473
    %v1475 = vand.u32 %v1474, 4294901760
    %1476 = vmatpush1.msra.mxu0 %v1475
    %v1477 = vand.u32 %v874, 4294901760
    %v1478 = vsub.f32 %v874, %v1477
    %v1479 = vand.u32 %v1478, 4294901760
    %1480 = vmatprep.subr.mxu0 %v1479
    %v1481 = vand.u32 %v873, 4294901760
    %v1482 = vsub.f32 %v873, %v1481
    %v1483 = vand.u32 %v1482, 4294901760
    %1484 = vmatpush1.msra.mxu0 %v1483
    %v1485 = vand.u32 %v866, 4294901760
    %v1486 = vsub.f32 %v866, %v1485
    %v1487 = vand.u32 %v1486, 4294901760
    %1488 = vmatprep.subr.mxu0 %v1487
    %v1489 = vand.u32 %v865, 4294901760
    %v1490 = vsub.f32 %v865, %v1489
    %v1491 = vand.u32 %v1490, 4294901760
    %1492 = vmatpush1.msra.mxu0 %v1491
    %1493 = vmatprep.subr.mxu0 0.0
    %1494 = vmatpush2.msra.mxu0 0.0
    %1495 = vmatprep.subr.mxu0 0.0
    %1496 = vmatpush2.msra.mxu0 0.0
    %1497 = vmatprep.subr.mxu0 0.0
    %1498 = vmatpush2.msra.mxu0 0.0
    %1499 = vmatprep.subr.mxu0 0.0
    %1500 = vmatpush2.msra.mxu0 0.0
    %1501 = vmatprep.subr.mxu0 0.0
    %1502 = vmatpush2.msra.mxu0 0.0
    %1503 = vmatprep.subr.mxu0 0.0
    %1504 = vmatpush2.msra.mxu0 0.0
    %1505 = vmatprep.subr.mxu0 0.0
    %1506 = vmatpush2.msra.mxu0 0.0
    %1507 = vmatprep.subr.mxu0 0.0
    %1508 = vmatpush2.msra.mxu0 0.0
    %1509 = vmatprep.subr.mxu0 0.0
    %1510 = vmatpush2.msra.mxu0 0.0
    %1511 = vmatprep.subr.mxu0 0.0
    %1512 = vmatpush2.msra.mxu0 0.0
    %1513 = vmatprep.subr.mxu0 0.0
    %1514 = vmatpush2.msra.mxu0 0.0
    %1515 = vmatprep.subr.mxu0 0.0
    %1516 = vmatpush2.msra.mxu0 0.0
    %1517 = vmatprep.subr.mxu0 0.0
    %1518 = vmatpush2.msra.mxu0 0.0
    %1519 = vmatprep.subr.mxu0 0.0
    %1520 = vmatpush2.msra.mxu0 0.0
    %1521 = vmatprep.subr.mxu0 0.0
    %1522 = vmatpush2.msra.mxu0 0.0
    %1523 = vmatprep.subr.mxu0 0.0
    %1524 = vmatpush2.msra.mxu0 0.0
    %1525 = vmatprep.mubr.f32.mxu0 0.0
    %v1526 = vand.u32 %v924, 4294901760
    %1527 = vmatmul.mubr.f32.gmra.mxu0 %v1526
    %v1528 = vpop.f32.mrf.mxu0
    %v1529 = vadd.f32 %v1397, %v1528
    %v1530 = vpop.f32.mrf.mxu0
    %v1531 = vadd.f32 %v1399, %v1530
    %1532 = vdwg.mxu0
    %1533 = vmatprep.subr.mxu0 0.0
    %1534 = vmatpush1.msra.mxu0 0.0
    %1535 = vmatprep.subr.mxu0 0.0
    %1536 = vmatpush1.msra.mxu0 0.0
    %1537 = vmatprep.subr.mxu0 0.0
    %1538 = vmatpush1.msra.mxu0 0.0
    %1539 = vmatprep.subr.mxu0 0.0
    %1540 = vmatpush1.msra.mxu0 0.0
    %1541 = vmatprep.subr.mxu0 0.0
    %1542 = vmatpush1.msra.mxu0 0.0
    %1543 = vmatprep.subr.mxu0 0.0
    %1544 = vmatpush1.msra.mxu0 0.0
    %v1545 = vand.u32 %v140, 4294901760
    %1546 = vmatprep.subr.mxu0 %v1545
    %v1547 = vand.u32 %v140, 4294901760
    %1548 = vmatpush1.msra.mxu0 %v1547
    %v1549 = vand.u32 %v922, 4294901760
    %1550 = vmatprep.subr.mxu0 %v1549
    %v1551 = vand.u32 %v921, 4294901760
    %1552 = vmatpush1.msra.mxu0 %v1551
    %v1553 = vand.u32 %v914, 4294901760
    %1554 = vmatprep.subr.mxu0 %v1553
    %v1555 = vand.u32 %v913, 4294901760
    %1556 = vmatpush1.msra.mxu0 %v1555
    %v1557 = vand.u32 %v906, 4294901760
    %1558 = vmatprep.subr.mxu0 %v1557
    %v1559 = vand.u32 %v905, 4294901760
    %1560 = vmatpush1.msra.mxu0 %v1559
    %v1561 = vand.u32 %v898, 4294901760
    %1562 = vmatprep.subr.mxu0 %v1561
    %v1563 = vand.u32 %v897, 4294901760
    %1564 = vmatpush1.msra.mxu0 %v1563
    %v1565 = vand.u32 %v856, 4294901760
    %1566 = vmatprep.subr.mxu0 %v1565
    %v1567 = vand.u32 %v855, 4294901760
    %1568 = vmatpush1.msra.mxu0 %v1567
    %v1569 = vand.u32 %v890, 4294901760
    %1570 = vmatprep.subr.mxu0 %v1569
    %v1571 = vand.u32 %v889, 4294901760
    %1572 = vmatpush1.msra.mxu0 %v1571
    %v1573 = vand.u32 %v882, 4294901760
    %1574 = vmatprep.subr.mxu0 %v1573
    %v1575 = vand.u32 %v881, 4294901760
    %1576 = vmatpush1.msra.mxu0 %v1575
    %v1577 = vand.u32 %v874, 4294901760
    %1578 = vmatprep.subr.mxu0 %v1577
    %v1579 = vand.u32 %v873, 4294901760
    %1580 = vmatpush1.msra.mxu0 %v1579
    %v1581 = vand.u32 %v866, 4294901760
    %1582 = vmatprep.subr.mxu0 %v1581
    %v1583 = vand.u32 %v865, 4294901760
    %1584 = vmatpush1.msra.mxu0 %v1583
    %1585 = vmatprep.subr.mxu0 0.0
    %1586 = vmatpush2.msra.mxu0 0.0
    %1587 = vmatprep.subr.mxu0 0.0
    %1588 = vmatpush2.msra.mxu0 0.0
    %1589 = vmatprep.subr.mxu0 0.0
    %1590 = vmatpush2.msra.mxu0 0.0
    %1591 = vmatprep.subr.mxu0 0.0
    %1592 = vmatpush2.msra.mxu0 0.0
    %1593 = vmatprep.subr.mxu0 0.0
    %1594 = vmatpush2.msra.mxu0 0.0
    %1595 = vmatprep.subr.mxu0 0.0
    %1596 = vmatpush2.msra.mxu0 0.0
    %1597 = vmatprep.subr.mxu0 0.0
    %1598 = vmatpush2.msra.mxu0 0.0
    %1599 = vmatprep.subr.mxu0 0.0
    %1600 = vmatpush2.msra.mxu0 0.0
    %1601 = vmatprep.subr.mxu0 0.0
    %1602 = vmatpush2.msra.mxu0 0.0
    %1603 = vmatprep.subr.mxu0 0.0
    %1604 = vmatpush2.msra.mxu0 0.0
    %1605 = vmatprep.subr.mxu0 0.0
    %1606 = vmatpush2.msra.mxu0 0.0
    %1607 = vmatprep.subr.mxu0 0.0
    %1608 = vmatpush2.msra.mxu0 0.0
    %1609 = vmatprep.subr.mxu0 0.0
    %1610 = vmatpush2.msra.mxu0 0.0
    %1611 = vmatprep.subr.mxu0 0.0
    %1612 = vmatpush2.msra.mxu0 0.0
    %1613 = vmatprep.subr.mxu0 0.0
    %1614 = vmatpush2.msra.mxu0 0.0
    %1615 = vmatprep.subr.mxu0 0.0
    %1616 = vmatpush2.msra.mxu0 0.0
    %1617 = vmatprep.mubr.f32.mxu0 0.0
    %v1618 = vand.u32 %v924, 4294901760
    %1619 = vmatmul.mubr.f32.gmra.mxu0 %v1618
    %v1620 = vpop.f32.mrf.mxu0
    %v1621 = vadd.f32 %v1529, %v1620
    %v1622 = vpop.f32.mrf.mxu0
    %v1623 = vadd.f32 %v1531, %v1622
    %1624 = vdwg.mxu0
    %vm1625 = vcmp.gt.f32.partialorder %v1621, 20.0
    %vm1626 = vcmp.gt.f32.partialorder %v1623, 20.0
    %v1627 = vmin.f32 %v1621, 20.0
    %v1628 = vmin.f32 %v1623, 20.0
    %v1629 = vmul.f32 %v1627, 1.442695
    %v1630 = vpow.pop %v1629
    %v1631 = vmul.f32 %v1628, 1.442695
    %v1632 = vpow.pop %v1631
    %v1633 = vadd.f32 %v1630, 1.0
    %v1634 = vadd.f32 %v1632, 1.0
    %v1635 = vlog2.pop %v1633
    %v1636 = vmul.f32 %v1635, 0.6931472
    %v1637 = vlog2.pop %v1634
    %v1638 = vmul.f32 %v1637, 0.6931472
    %v1639 = vsel %vm1625, %v1621, %v1636
    %v1640 = vsel %vm1626, %v1623, %v1638
    %1641 = vst [vmem:[#allocation7] sm:$0xff] %v1639
    %1642 = vst [vmem:[#allocation7 + $0x8] sm:$0xff] %v1640
    // Predicated region
    $region18: #{tpu_custom_call.1} parent=1 // pred_check
      _
    $region19: #{tpu_custom_call.1} parent=1 // pred_check_branch
      %1644 = sbr.rel (0) target = $region21
    $region20: #{tpu_custom_call.1} parent=1 // pred_region
      %s1646 = ssub.s32 256, 256
      %1647 = vsyncadd [#allocation4], %s1646
      %s1649 = sshll.u32 [#allocation7], 4
      %s1650 = int_to_ptr.vmem [resolvable:$true] %s1649
      %1652 = dma.vmem_to_hbm [thread:$0]  %s1650, 256, %s2, [#allocation4]
    $region21: #{tpu_custom_call.1} parent=1 // pred_fallthru
      _
    // Predicated region
    $region22: #{tpu_custom_call.1} parent=1 // pred_check
      _
    $region23: #{tpu_custom_call.1} parent=1 // pred_check_branch
      %1654 = sbr.rel (0) target = $region25
    $region24: #{tpu_custom_call.1} parent=1 // pred_region
      %1655 = dma.done [#allocation4], 256
    $region25: #{tpu_custom_call.1} parent=1 // pred_fallthru
      _
    %1656 = vsyncpa [#allocation3], 1
    %1657 = vsyncpa [#allocation6], 1
    %1658 = vsyncpa [#allocation4], 1

</llo_original>
